<compile_context>
chip_gen: v6e
topology: v6e:2x2x1
jax: 0.10.0
libtpu: 0.0.40
codegen_flags: <defaults>
</compile_context>

<pallas_src>
import functools
import math

import jax
import jax.numpy as jnp
import numpy as np
from jax import lax
from jax.experimental import pallas as pl
from jax.experimental.pallas import tpu as pltpu


# ----------------------------------- kernel -----------------------------------

def _ppl_partial_sumsq_kernel(y_ref, gw_ref, out_ref, acc_ref, *,
                              tk, n_batch, y_resident):
    k = pl.program_id(1)

    @pl.when(k == 0)
    def _():
        acc_ref[...] = jnp.zeros_like(acc_ref)

    if y_resident:
        # y lives fully in VMEM (one DMA for the whole grid); slice the K tile here.
        off = pl.multiple_of(k * tk, 128)
        y_tile = y_ref[:, pl.ds(off, tk)]
    else:
        y_tile = y_ref[...]

    # grads^T accumulation over the CHW contraction:
    #   (jk_block, TK) x (B, TK) -> (jk_block, B), contracting the last axis of both.
    # Large dim on M (gw is the streamed MXU LHS), bf16 inputs, f32 accumulation.
    acc_ref[...] += lax.dot_general(
        gw_ref[...], y_tile,
        dimension_numbers=(((1,), (1,)), ((), ())),
        preferred_element_type=jnp.float32)

    @pl.when(k == pl.num_programs(1) - 1)
    def _():
        g = acc_ref[...]                                     # (jk_block, B) f32
        sumsq = jnp.sum(g * g, axis=0, keepdims=True)        # (1, B) sublane reduce
        # Pack the per-batch partial sums into one lane-dense (1, 1, 128) row.
        lane = lax.broadcasted_iota(jnp.int32, (1, 128), 1)
        row = jnp.zeros((1, 128), jnp.float32)
        for b in range(n_batch):                             # static tiny loop
            sb = sumsq[:, b:b + 1]                           # (1, 1)
            row = jnp.where(lane == b, jnp.broadcast_to(sb, row.shape), row)
        out_ref[...] = row.reshape(1, 1, 128)


# ------------------------------ tiling / sizing -------------------------------

def _round_up(x, m):
    return (x + m - 1) // m * m


def _num_tensorcores():
    """2 on v7x (dual TensorCore), else 1.  Conservative: default to 1."""
    try:
        kind = (jax.devices()[0].device_kind or "").lower()
    except Exception:
        return 1
    return 2 if ("v7" in kind or "7x" in kind) else 1


def _vmem_capacity_bytes(n_tc):
    """Per-core VMEM capacity; capped at 64 MiB when 2 TCs are detected (v7x)."""
    cap = None
    try:
        cap = int(pltpu.get_tpu_info().vmem_capacity_bytes)
    except Exception:
        cap = None
    if not cap or cap <= 0:
        cap = 64 * 1024 * 1024          # conservative fallback (v7x per-core VMEM)
    if n_tc >= 2:
        cap = min(cap, 64 * 1024 * 1024)
    return cap


def _plan_tiling(chw_pad, jk_block, batch, *, capacity):
    """Pick (tk, y_resident): largest tk (multiple of 128 dividing chw_pad) whose
    double-buffered bf16 gw tiles + resident y + lane-padded f32 accumulator fit
    ~half of the per-core VMEM capacity."""
    budget = capacity // 2
    acc_bytes = _round_up(jk_block, 8) * 128 * 4                 # lane-padded accumulator
    y_res_bytes = 2 * _round_up(batch, 16) * chw_pad * 2         # resident y, bf16, 2 bufs
    y_resident = y_res_bytes <= budget // 4
    avail = budget - acc_bytes - (y_res_bytes if y_resident else 0) - (1 << 20)
    per_tk = 2 * jk_block * 2                                    # gw bf16 bytes / K elem, x2 bufs
    if not y_resident:
        per_tk += 2 * _round_up(batch, 16) * 2                   # + tiled y bytes / K elem
    tk = (max(avail, 0) // per_tk) // 128 * 128
    tk = max(128, min(tk, chw_pad))
    while chw_pad % tk != 0:
        tk -= 128
    return max(tk, 128), y_resident


# --------------------------------- wrapper ------------------------------------

def path_length_penalty(w, x, y, gw, exp_sum_a, steps, *, beta,
                        tk=None, num_jk_blocks=None):
    """Returns (loss, new_exp_sum_a, new_steps) matching the PyTorch forward.

    `gw` is the (JK, CHW) synthetic-generator weight, fed untransposed; ideally it is
    already stored in bf16 (the kernel streams it in bf16 either way)."""
    B, num_ws, w_dim = w.shape
    _, C, H, W = x.shape
    jk = num_ws * w_dim
    chw = C * H * W
    image_size = H * W

    n_tc = _num_tensorcores()
    if num_jk_blocks is None:
        num_jk_blocks = 2 if (n_tc >= 2 and jk >= 32) else 1
    n_jm = int(num_jk_blocks)

    chw_pad = _round_up(chw, 128)
    jk_pad = _round_up(jk, 16 * n_jm)
    jk_block = jk_pad // n_jm

    capacity = _vmem_capacity_bytes(n_tc)
    auto_tk, y_resident = _plan_tiling(chw_pad, jk_block, B, capacity=capacity)
    if tk is None:
        tk = auto_tk
    assert chw_pad % tk == 0 and tk % 128 == 0, (chw_pad, tk)
    nk = chw_pad // tk

    # bf16 streaming operands, zero-padded to legal tile multiples.  Zero padding is
    # inert: padded CHW columns multiply y==0, padded JK rows give zero grads / sumsq.
    y2 = jnp.asarray(y).reshape(B, chw).astype(jnp.bfloat16)
    gw2 = jnp.asarray(gw, jnp.bfloat16)
    if chw_pad != chw:
        y2 = jnp.pad(y2, ((0, 0), (0, chw_pad - chw)))
    if (jk_pad, chw_pad) != tuple(gw2.shape):
        gw2 = jnp.pad(gw2, ((0, jk_pad - gw2.shape[0]), (0, chw_pad - gw2.shape[1])))

    # Explicit VMEM accounting (lane/sublane-padded) -> explicit vmem_limit_bytes.
    acc_bytes = _round_up(jk_block, 8) * 128 * 4
    gw_tile_bytes = 2 * jk_block * tk * 2
    y_buf_bytes = (2 * _round_up(B, 16) * chw_pad * 2 if y_resident
                   else 2 * _round_up(B, 16) * tk * 2)
    out_bytes = 2 * n_jm * 8 * 128 * 4
    vmem_needed = gw_tile_bytes + y_buf_bytes + acc_bytes + out_bytes + (2 << 20)
    vmem_limit = int(min(max(vmem_needed, 16 << 20), capacity))

    if y_resident:
        y_spec = pl.BlockSpec((B, chw_pad), lambda jm, k: (0, 0))   # one DMA total
    else:
        y_spec = pl.BlockSpec((B, tk), lambda jm, k: (0, k))        # coarse fallback

    kernel = functools.partial(_ppl_partial_sumsq_kernel,
                               tk=tk, n_batch=B, y_resident=y_resident)

    grid_spec = pltpu.PrefetchScalarGridSpec(
        num_scalar_prefetch=0,
        grid=(n_jm, nk),
        in_specs=[
            y_spec,
            pl.BlockSpec((jk_block, tk), lambda jm, k: (jm, k)),    # gw row/K tile (bf16)
        ],
        out_specs=pl.BlockSpec((1, 1, 128), lambda jm, k: (jm, 0, 0)),
        scratch_shapes=[pltpu.VMEM((jk_block, B), jnp.float32)],    # grads^T accumulator
    )

    cost = pl.CostEstimate(
        flops=2 * B * chw_pad * jk_pad,
        transcendentals=0,
        bytes_accessed=int(gw2.size) * 2 + int(y2.size) * 2 + n_jm * 128 * 4,
    )

    partial_rows = pl.pallas_call(
        kernel,
        out_shape=jax.ShapeDtypeStruct((n_jm, 1, 128), jnp.float32),
        grid_spec=grid_spec,
        compiler_params=pltpu.CompilerParams(
            dimension_semantics=("parallel", "arbitrary"),  # JK blocks parallel, CHW reduction
            vmem_limit_bytes=vmem_limit),
        cost_estimate=cost,
    )(y2, gw2)

    # Tiny scalar epilogue in plain JAX: combine per-JK-block partials, loss + EMA update.
    sumsq = jnp.sum(partial_rows[:, 0, :B], axis=0)                  # (B,) f32
    norm = jnp.sqrt(sumsq / num_ws) / math.sqrt(image_size)          # (B,)

    exp_sum_a = jnp.asarray(exp_sum_a, jnp.float32)
    steps = jnp.asarray(steps, jnp.float32)
    steps_pos = steps > 0.0
    a = exp_sum_a / jnp.where(steps_pos, 1.0 - beta ** steps, 1.0)
    loss = jnp.where(steps_pos, jnp.mean((norm - a) ** 2), jnp.float32(0.0))
    mean_norm = jnp.mean(norm)
    new_a = exp_sum_a * beta + mean_norm * (1.0 - beta)
    new_steps = steps + 1.0
    return loss, new_a, new_steps


# ------------------- synthetic generator + pure-JAX reference ------------------

def generator(w, gw, x_shape):
    B = w.shape[0]
    return (w.reshape(B, -1) @ gw).reshape(x_shape)


def ref_forward(w, y, gw, exp_sum_a, steps, beta, x_shape):
    image_size = x_shape[2] * x_shape[3]
    # Match the kernel's bf16 streaming of y / gw (products exact; f32 accumulation).
    y_q = jnp.asarray(y, jnp.float32).astype(jnp.bfloat16).astype(jnp.float32)
    gw_q = jnp.asarray(gw, jnp.float32).astype(jnp.bfloat16).astype(jnp.float32)
    out_fn = lambda ww: jnp.sum(generator(ww, gw_q, x_shape) * y_q) / math.sqrt(image_size)
    grads = jax.grad(out_fn)(w)                              # == torch.autograd.grad
    norm = jnp.sqrt(jnp.mean(jnp.sum(grads ** 2, axis=2), axis=1))
    if float(steps) > 0:
        a = exp_sum_a / (1.0 - beta ** float(steps))
        loss = jnp.mean((norm - a) ** 2)
    else:
        loss = jnp.array(0.0, jnp.float32)
    mean = jnp.mean(norm)
    new_a = exp_sum_a * beta + mean * (1.0 - beta)
    new_steps = steps + 1.0
    return loss, new_a, new_steps


if __name__ == "__main__":
    B, C, H, W = 2, 4, 16, 16
    NUM_WS, W_DIM = 8, 32
    beta = 0.99

    key = jax.random.PRNGKey(0)
    k_w, k_g, k_y1, k_y2 = jax.random.split(key, 4)

    w = jax.random.normal(k_w, (B, NUM_WS, W_DIM), jnp.float32)
    # deterministic synthetic generator weight (the "module param" connecting w -> x)
    gw = jax.random.normal(k_g, (NUM_WS * W_DIM, C * H * W), jnp.float32) * 0.02
    gw_bf16 = gw.astype(jnp.bfloat16)     # weight stored once in the streaming dtype
    x = generator(w, gw, (B, C, H, W))

    exp_sum_a = jnp.float32(0.0)   # buffer: self.exp_sum_a
    steps = jnp.float32(0.0)       # buffer: self.steps

    for step_idx, k_y in enumerate((k_y1, k_y2)):  # exercise steps == 0 and steps > 0
        y = jax.random.normal(k_y, (B, C, H, W), jnp.float32)

        # First call: fully automatic tiling (single big K tile, auto JK split on v7x).
        # Second call: forced tk=256 and 2 JK blocks so the K accumulate/init/finalize
        # pipeline AND the parallel-JK partial-reduction path are exercised on any chip.
        kwargs = {} if step_idx == 0 else {"tk": 256, "num_jk_blocks": 2}
        loss, new_a, new_steps = path_length_penalty(
            w, x, y, gw_bf16, exp_sum_a, steps, beta=beta, **kwargs)
        jax.block_until_ready((loss, new_a, new_steps))

        ref_loss, ref_a, ref_steps = ref_forward(w, y, gw, exp_sum_a, steps, beta, x.shape)
        np.testing.assert_allclose(np.asarray(loss), np.asarray(ref_loss),
                                   rtol=2e-2, atol=1e-6)
        np.testing.assert_allclose(np.asarray(new_a), np.asarray(ref_a),
                                   rtol=2e-3, atol=1e-7)
        np.testing.assert_allclose(np.asarray(new_steps), np.asarray(ref_steps),
                                   rtol=0, atol=0)

        exp_sum_a, steps = new_a, new_steps

    print("KERNEL_OK")
</pallas_src>

<mosaic_0001>
module attributes {stable_mosaic.version = 11 : i64} {
  func.func @_ppl_partial_sumsq_kernel(%arg0: i32, %arg1: i32, %arg2: memref<2x1024xbf16, #tpu.memory_space<vmem>>, %arg3: memref<256x1024xbf16, #tpu.memory_space<vmem>>, %arg4: memref<1x1x128xf32, #tpu.memory_space<vmem>>, %arg5: memref<256x2xf32, #tpu.memory_space<vmem>>) attributes {dimension_semantics = [#tpu.dimension_semantics<parallel>, #tpu.dimension_semantics<arbitrary>], iteration_bounds = array<i64: 1, 1>, scalar_prefetch = 0 : i64, scratch_operands = 1 : i64, tpu.core_type = #tpu.core_type<tc>, window_params = [{pipeline_mode = #tpu.pipeline_mode<synchronous>, transform_indices = @transform_0, window_bounds = array<i64: 2, 1024>}, {transform_indices = @transform_1, window_bounds = array<i64: 256, 1024>}, {transform_indices = @transform_2, window_bounds = array<i64: 1, 1, 128>}]} {
    %c0_i32 = arith.constant 0 : i32
    %0 = arith.cmpi eq, %arg1, %c0_i32 : i32
    %1 = arith.extui %0 : i1 to i32
    %c0_i32_0 = arith.constant 0 : i32
    %2 = arith.cmpi ne, %1, %c0_i32_0 : i32
    scf.if %2 {
      %cst_9 = arith.constant 0.000000e+00 : f32
      %15 = vector.broadcast %cst_9 : f32 to vector<256x2xf32>
      %c0_10 = arith.constant 0 : index
      %c0_11 = arith.constant 0 : index
      %16 = vector.load %arg5[%c0_10, %c0_11] : memref<256x2xf32, #tpu.memory_space<vmem>>, vector<256x2xf32>
      tpu.vector_store %arg5[%c0_10, %c0_11], %15 {strides = array<i32>} : memref<256x2xf32, #tpu.memory_space<vmem>>, vector<256x2xf32>,
    } else {
    }
    %c1024_i32 = arith.constant 1024 : i32
    %3 = arith.muli %arg1, %c1024_i32 : i32
    %4 = tpu.assume_multiple %3, 128 : i32
    %c0 = arith.constant 0 : index
    %5 = arith.index_cast %4 : i32 to index
    %6 = vector.load %arg2[%c0, %5] : memref<2x1024xbf16, #tpu.memory_space<vmem>>, vector<2x1024xbf16>
    %c0_1 = arith.constant 0 : index
    %c0_2 = arith.constant 0 : index
    %7 = vector.load %arg5[%c0_1, %c0_2] : memref<256x2xf32, #tpu.memory_space<vmem>>, vector<256x2xf32>
    %c0_3 = arith.constant 0 : index
    %c0_4 = arith.constant 0 : index
    %8 = vector.load %arg3[%c0_3, %c0_4] : memref<256x1024xbf16, #tpu.memory_space<vmem>>, vector<256x1024xbf16>
    %cst = arith.constant dense<0.000000e+00> : vector<256x2xf32>
    %9 = tpu.matmul %8, %6, %cst {dimension_numbers = #tpu.dot_dimension_numbers<[1], [1], [0], [0], [0, 0, 1, 0], [], []>} : vector<256x1024xbf16>, vector<2x1024xbf16>, vector<256x2xf32> -> vector<256x2xf32>
    %10 = arith.addf %7, %9 : vector<256x2xf32>
    %c0_5 = arith.constant 0 : index
    %c0_6 = arith.constant 0 : index
    %11 = vector.load %arg5[%c0_5, %c0_6] : memref<256x2xf32, #tpu.memory_space<vmem>>, vector<256x2xf32>
    tpu.vector_store %arg5[%c0_5, %c0_6], %10 {strides = array<i32>} : memref<256x2xf32, #tpu.memory_space<vmem>>, vector<256x2xf32>,
    %c0_i32_7 = arith.constant 0 : i32
    %12 = arith.cmpi eq, %arg1, %c0_i32_7 : i32
    %13 = arith.extui %12 : i1 to i32
    %c0_i32_8 = arith.constant 0 : i32
    %14 = arith.cmpi ne, %13, %c0_i32_8 : i32
    scf.if %14 {
      %c0_9 = arith.constant 0 : index
      %c0_10 = arith.constant 0 : index
      %15 = vector.load %arg5[%c0_9, %c0_10] : memref<256x2xf32, #tpu.memory_space<vmem>>, vector<256x2xf32>
      %16 = arith.mulf %15, %15 : vector<256x2xf32>
      %cst_11 = arith.constant dense<0.000000e+00> : vector<2xf32>
      %17 = vector.multi_reduction <add>, %16, %cst_11 [0] : vector<256x2xf32> to vector<2xf32>
      %18 = vector.shape_cast %17 : vector<2xf32> to vector<1x2xf32>
      %19 = tpu.iota {dimensions = array<i32: 1>} : vector<1x128xi32>
      %cst_12 = arith.constant 0.000000e+00 : f32
      %20 = vector.broadcast %cst_12 : f32 to vector<1x128xf32>
      %21 = vector.extract_strided_slice %18 {offsets = [0, 0], sizes = [1, 1], strides = [1, 1]} : vector<1x2xf32> to vector<1x1xf32>
      %c0_i32_13 = arith.constant 0 : i32
      %22 = vector.broadcast %c0_i32_13 : i32 to vector<1x128xi32>
      %23 = arith.cmpi eq, %19, %22 : vector<1x128xi32>
      %24 = vector.shape_cast %21 : vector<1x1xf32> to vector<1x1xf32>
      %25 = vector.broadcast %24 : vector<1x1xf32> to vector<1x128xf32>
      %26 = arith.select %23, %25, %20 : vector<1x128xi1>, vector<1x128xf32>
      %27 = vector.extract_strided_slice %18 {offsets = [0, 1], sizes = [1, 1], strides = [1, 1]} : vector<1x2xf32> to vector<1x1xf32>
      %c1_i32 = arith.constant 1 : i32
      %28 = vector.broadcast %c1_i32 : i32 to vector<1x128xi32>
      %29 = arith.cmpi eq, %19, %28 : vector<1x128xi32>
      %30 = vector.shape_cast %27 : vector<1x1xf32> to vector<1x1xf32>
      %31 = vector.broadcast %30 : vector<1x1xf32> to vector<1x128xf32>
      %32 = arith.select %29, %31, %26 : vector<1x128xi1>, vector<1x128xf32>
      %33 = vector.shape_cast %32 : vector<1x128xf32> to vector<1x1x128xf32>
      %c0_14 = arith.constant 0 : index
      %c0_15 = arith.constant 0 : index
      %c0_16 = arith.constant 0 : index
      %34 = vector.load %arg4[%c0_14, %c0_15, %c0_16] : memref<1x1x128xf32, #tpu.memory_space<vmem>>, vector<1x1x128xf32>
      tpu.vector_store %arg4[%c0_14, %c0_15, %c0_16], %33 {strides = array<i32>} : memref<1x1x128xf32, #tpu.memory_space<vmem>>, vector<1x1x128xf32>,
    } else {
    }
    return
  }
  func.func @transform_0(%arg0: i32, %arg1: i32) -> (i32, i32) {
    %c0_i32 = arith.constant 0 : i32
    %c0_i32_0 = arith.constant 0 : i32
    %c0_i32_1 = arith.constant 0 : i32
    return %c0_i32, %c0_i32_0 : i32, i32
  }
  func.func @transform_1(%arg0: i32, %arg1: i32) -> (i32, i32) {
    %c0_i32 = arith.constant 0 : i32
    return %arg0, %arg1 : i32, i32
  }
  func.func @transform_2(%arg0: i32, %arg1: i32) -> (i32, i32, i32) {
    %c0_i32 = arith.constant 0 : i32
    %c0_i32_0 = arith.constant 0 : i32
    %c0_i32_1 = arith.constant 0 : i32
    return %arg0, %c0_i32, %c0_i32_0 : i32, i32, i32
  }
}

</mosaic_0001>

<llo_original>
// kernel: tpu_custom_call.1
$region0: #{tpu_custom_call.1}
  #allocation0 [shape = 'u32[]', space=smem, size = 0x4, offset = 0x4, fixed_abs, tag = 'smem constant byte address 0x4 - core index']
  #allocation1 [shape = 'u32[144,128]{1,0:T(1,128)}', space=vmem, size = 0x12000, scoped, tag = 'internal scratch']
  #allocation2 [shape = 'f32[256,2]{1,0:T(8,128)}', space=vmem, size = 0x20000, scoped, tag = 'scratch operand']
  %s0 = inlined_call_operand.hbm [shape: bf16[2,1024], index: 0, kind: input, shape index: {}]
  %s1 = inlined_call_operand.hbm [shape: bf16[256,1024], index: 1, kind: input, shape index: {}]
  %s2 = inlined_call_operand.hbm [shape: f32[1,1,128], index: 2, kind: output, shape index: {}]
  %s3 = sld [smem:[#allocation0]]
  $region34: #{tpu_custom_call.1} parent=0
    _
  %s5 = ssub.s32 1, %s3
  %s6 = scalar_select 0, %s5, %s3
  $region1: #{tpu_custom_call.1} parent=0
    #allocation3 [shape = 'u8[4096]{0}', space=vmem, size = 0x1000, scoped, tag = 'input window, operand 0, single buffered']
    #allocation4 [shape = 's32[1]{0}', space=sflag, size = 0x4, scoped, tag = 'scoped memory for tpu_custom_call.1']
    #allocation5 [shape = 's32[1]{0}', space=sflag, size = 0x4, scoped, tag = 'scoped memory for tpu_custom_call.1']
    #allocation6 [shape = 'u8[524288]{0}', space=vmem, size = 0x80000, scoped, tag = 'input window, operand 1, single buffered']
    #allocation7 [shape = 's32[1]{0}', space=sflag, size = 0x4, scoped, tag = 'scoped memory for tpu_custom_call.1']
    #allocation8 [shape = 'u8[512]{0}', space=vmem, size = 0x400, scoped, tag = 'output window, operand 0, single buffered']
    %7 = vsyncpa [#allocation4], 0
    %8 = vsyncpa [#allocation7], 0
    %9 = vsyncpa [#allocation5], 0
    // Predicated region
    $region2: #{tpu_custom_call.1} parent=1 // pred_check
      _
    $region3: #{tpu_custom_call.1} parent=1 // pred_check_branch
      %11 = sbr.rel (0) target = $region5
    $region4: #{tpu_custom_call.1} parent=1 // pred_region
      %s13 = ssub.s32 128, 128
      %14 = vsyncadd [#allocation4], %s13
      %s16 = sshll.u32 [#allocation3], 4
      %s17 = int_to_ptr.vmem [resolvable:$true] %s16
      %19 = dma.hbm_to_vmem [thread:$0]  %s0, 128, %s17, [#allocation4]
    $region5: #{tpu_custom_call.1} parent=1 // pred_fallthru
      _
    // Predicated region
    $region6: #{tpu_custom_call.1} parent=1 // pred_check
      _
    $region7: #{tpu_custom_call.1} parent=1 // pred_check_branch
      %21 = sbr.rel (0) target = $region9
    $region8: #{tpu_custom_call.1} parent=1 // pred_region
      %s23 = ssub.s32 16384, 16384
      %24 = vsyncadd [#allocation7], %s23
      %s25 = sshll.u32 [#allocation6], 4
      %s26 = int_to_ptr.vmem [resolvable:$true] %s25
      %31 = dma.hbm_to_vmem [thread:$0]  %s1, 16384, %s26, [#allocation7], 512, 512, 32
    $region9: #{tpu_custom_call.1} parent=1 // pred_fallthru
      _
    // Predicated region
    $region10: #{tpu_custom_call.1} parent=1 // pred_check
      _
    $region11: #{tpu_custom_call.1} parent=1 // pred_check_branch
      %33 = sbr.rel (0) target = $region13
    $region12: #{tpu_custom_call.1} parent=1 // pred_region
      %34 = dma.done [#allocation4], 128
    $region13: #{tpu_custom_call.1} parent=1 // pred_fallthru
      _
    // Predicated region
    $region14: #{tpu_custom_call.1} parent=1 // pred_check
      _
    $region15: #{tpu_custom_call.1} parent=1 // pred_check_branch
      %36 = sbr.rel (0) target = $region17
    $region16: #{tpu_custom_call.1} parent=1 // pred_region
      %37 = dma.done [#allocation7], 16384
    $region17: #{tpu_custom_call.1} parent=1 // pred_fallthru
      _
    %p39 = scmp.eq.s32.totalorder 0, 0
    // Predicated region
    $region18: #{tpu_custom_call.1} parent=1 // pred_check
      %p40 = pneg %p39
    $region19: #{tpu_custom_call.1} parent=1 // pred_check_branch
      %42 = sbr.rel (%p40) target = $region21
    $region20: #{tpu_custom_call.1} parent=1 // pred_region
      %vm43 = vcmask 15360
      %44 = vst.msk [vmem:[#allocation2] sm:$0xff] %vm43, 0.0
      %45 = vst.msk [vmem:[#allocation2 + $0x8] sm:$0xff] %vm43, 0.0
      %46 = vst.msk [vmem:[#allocation2 + $0x10] sm:$0xff] %vm43, 0.0
      %47 = vst.msk [vmem:[#allocation2 + $0x18] sm:$0xff] %vm43, 0.0
      %48 = vst.msk [vmem:[#allocation2 + $0x20] sm:$0xff] %vm43, 0.0
      %49 = vst.msk [vmem:[#allocation2 + $0x28] sm:$0xff] %vm43, 0.0
      %50 = vst.msk [vmem:[#allocation2 + $0x30] sm:$0xff] %vm43, 0.0
      %51 = vst.msk [vmem:[#allocation2 + $0x38] sm:$0xff] %vm43, 0.0
      %52 = vst.msk [vmem:[#allocation2 + $0x40] sm:$0xff] %vm43, 0.0
      %53 = vst.msk [vmem:[#allocation2 + $0x48] sm:$0xff] %vm43, 0.0
      %54 = vst.msk [vmem:[#allocation2 + $0x50] sm:$0xff] %vm43, 0.0
      %55 = vst.msk [vmem:[#allocation2 + $0x58] sm:$0xff] %vm43, 0.0
      %56 = vst.msk [vmem:[#allocation2 + $0x60] sm:$0xff] %vm43, 0.0
      %57 = vst.msk [vmem:[#allocation2 + $0x68] sm:$0xff] %vm43, 0.0
      %58 = vst.msk [vmem:[#allocation2 + $0x70] sm:$0xff] %vm43, 0.0
      %59 = vst.msk [vmem:[#allocation2 + $0x78] sm:$0xff] %vm43, 0.0
      %60 = vst.msk [vmem:[#allocation2 + $0x80] sm:$0xff] %vm43, 0.0
      %61 = vst.msk [vmem:[#allocation2 + $0x88] sm:$0xff] %vm43, 0.0
      %62 = vst.msk [vmem:[#allocation2 + $0x90] sm:$0xff] %vm43, 0.0
      %63 = vst.msk [vmem:[#allocation2 + $0x98] sm:$0xff] %vm43, 0.0
      %64 = vst.msk [vmem:[#allocation2 + $0xa0] sm:$0xff] %vm43, 0.0
      %65 = vst.msk [vmem:[#allocation2 + $0xa8] sm:$0xff] %vm43, 0.0
      %66 = vst.msk [vmem:[#allocation2 + $0xb0] sm:$0xff] %vm43, 0.0
      %67 = vst.msk [vmem:[#allocation2 + $0xb8] sm:$0xff] %vm43, 0.0
      %68 = vst.msk [vmem:[#allocation2 + $0xc0] sm:$0xff] %vm43, 0.0
      %69 = vst.msk [vmem:[#allocation2 + $0xc8] sm:$0xff] %vm43, 0.0
      %70 = vst.msk [vmem:[#allocation2 + $0xd0] sm:$0xff] %vm43, 0.0
      %71 = vst.msk [vmem:[#allocation2 + $0xd8] sm:$0xff] %vm43, 0.0
      %72 = vst.msk [vmem:[#allocation2 + $0xe0] sm:$0xff] %vm43, 0.0
      %73 = vst.msk [vmem:[#allocation2 + $0xe8] sm:$0xff] %vm43, 0.0
      %74 = vst.msk [vmem:[#allocation2 + $0xf0] sm:$0xff] %vm43, 0.0
      %75 = vst.msk [vmem:[#allocation2 + $0xf8] sm:$0xff] %vm43, 0.0
    $region21: #{tpu_custom_call.1} parent=1 // pred_fallthru
      _
    %s76 = smul.u32 0, 1024
    %s77 = sshra.s32 %s76, 7
    %s78 = sand.u32 %s76, 127
    %s79 = scalar_lea.vmem [#allocation3], %s77
    %v80 = vld [vmem:[%s79] sm:$0xff]
    %v81 = vld [vmem:[#allocation2] sm:$0xff]
    %v82 = vld [vmem:[#allocation2 + $0x8] sm:$0xff]
    %v83 = vld [vmem:[#allocation2 + $0x10] sm:$0xff]
    %v84 = vld [vmem:[#allocation2 + $0x18] sm:$0xff]
    %v85 = vld [vmem:[#allocation2 + $0x20] sm:$0xff]
    %v86 = vld [vmem:[#allocation2 + $0x28] sm:$0xff]
    %v87 = vld [vmem:[#allocation2 + $0x30] sm:$0xff]
    %v88 = vld [vmem:[#allocation2 + $0x38] sm:$0xff]
    %v89 = vld [vmem:[#allocation2 + $0x40] sm:$0xff]
    %v90 = vld [vmem:[#allocation2 + $0x48] sm:$0xff]
    %v91 = vld [vmem:[#allocation2 + $0x50] sm:$0xff]
    %v92 = vld [vmem:[#allocation2 + $0x58] sm:$0xff]
    %v93 = vld [vmem:[#allocation2 + $0x60] sm:$0xff]
    %v94 = vld [vmem:[#allocation2 + $0x68] sm:$0xff]
    %v95 = vld [vmem:[#allocation2 + $0x70] sm:$0xff]
    %v96 = vld [vmem:[#allocation2 + $0x78] sm:$0xff]
    %v97 = vld [vmem:[#allocation2 + $0x80] sm:$0xff]
    %v98 = vld [vmem:[#allocation2 + $0x88] sm:$0xff]
    %v99 = vld [vmem:[#allocation2 + $0x90] sm:$0xff]
    %v100 = vld [vmem:[#allocation2 + $0x98] sm:$0xff]
    %v101 = vld [vmem:[#allocation2 + $0xa0] sm:$0xff]
    %v102 = vld [vmem:[#allocation2 + $0xa8] sm:$0xff]
    %v103 = vld [vmem:[#allocation2 + $0xb0] sm:$0xff]
    %v104 = vld [vmem:[#allocation2 + $0xb8] sm:$0xff]
    %v105 = vld [vmem:[#allocation2 + $0xc0] sm:$0xff]
    %v106 = vld [vmem:[#allocation2 + $0xc8] sm:$0xff]
    %v107 = vld [vmem:[#allocation2 + $0xd0] sm:$0xff]
    %v108 = vld [vmem:[#allocation2 + $0xd8] sm:$0xff]
    %v109 = vld [vmem:[#allocation2 + $0xe0] sm:$0xff]
    %v110 = vld [vmem:[#allocation2 + $0xe8] sm:$0xff]
    %v111 = vld [vmem:[#allocation2 + $0xf0] sm:$0xff]
    %v112 = vld [vmem:[#allocation2 + $0xf8] sm:$0xff]
    %v113 = vld [vmem:[#allocation6] sm:$0xff]
    %v114 = vld [vmem:[#allocation6 + $0x8] sm:$0xff]
    %v115 = vld [vmem:[#allocation6 + $0x10] sm:$0xff]
    %v116 = vld [vmem:[#allocation6 + $0x18] sm:$0xff]
    %v117 = vld [vmem:[#allocation6 + $0x20] sm:$0xff]
    %v118 = vld [vmem:[#allocation6 + $0x28] sm:$0xff]
    %v119 = vld [vmem:[#allocation6 + $0x30] sm:$0xff]
    %v120 = vld [vmem:[#allocation6 + $0x38] sm:$0xff]
    %v121 = vld [vmem:[#allocation6 + $0x40] sm:$0xff]
    %v122 = vld [vmem:[#allocation6 + $0x48] sm:$0xff]
    %v123 = vld [vmem:[#allocation6 + $0x50] sm:$0xff]
    %v124 = vld [vmem:[#allocation6 + $0x58] sm:$0xff]
    %v125 = vld [vmem:[#allocation6 + $0x60] sm:$0xff]
    %v126 = vld [vmem:[#allocation6 + $0x68] sm:$0xff]
    %v127 = vld [vmem:[#allocation6 + $0x70] sm:$0xff]
    %v128 = vld [vmem:[#allocation6 + $0x78] sm:$0xff]
    %v129 = vld [vmem:[#allocation6 + $0x80] sm:$0xff]
    %v130 = vld [vmem:[#allocation6 + $0x88] sm:$0xff]
    %v131 = vld [vmem:[#allocation6 + $0x90] sm:$0xff]
    %v132 = vld [vmem:[#allocation6 + $0x98] sm:$0xff]
    %v133 = vld [vmem:[#allocation6 + $0xa0] sm:$0xff]
    %v134 = vld [vmem:[#allocation6 + $0xa8] sm:$0xff]
    %v135 = vld [vmem:[#allocation6 + $0xb0] sm:$0xff]
    %v136 = vld [vmem:[#allocation6 + $0xb8] sm:$0xff]
    %v137 = vld [vmem:[#allocation6 + $0xc0] sm:$0xff]
    %v138 = vld [vmem:[#allocation6 + $0xc8] sm:$0xff]
    %v139 = vld [vmem:[#allocation6 + $0xd0] sm:$0xff]
    %v140 = vld [vmem:[#allocation6 + $0xd8] sm:$0xff]
    %v141 = vld [vmem:[#allocation6 + $0xe0] sm:$0xff]
    %v142 = vld [vmem:[#allocation6 + $0xe8] sm:$0xff]
    %v143 = vld [vmem:[#allocation6 + $0xf0] sm:$0xff]
    %v144 = vld [vmem:[#allocation6 + $0xf8] sm:$0xff]
    %v145 = vld [vmem:[#allocation6 + $0x100] sm:$0xff]
    %v146 = vld [vmem:[#allocation6 + $0x108] sm:$0xff]
    %v147 = vld [vmem:[#allocation6 + $0x110] sm:$0xff]
    %v148 = vld [vmem:[#allocation6 + $0x118] sm:$0xff]
    %v149 = vld [vmem:[#allocation6 + $0x120] sm:$0xff]
    %v150 = vld [vmem:[#allocation6 + $0x128] sm:$0xff]
    %v151 = vld [vmem:[#allocation6 + $0x130] sm:$0xff]
    %v152 = vld [vmem:[#allocation6 + $0x138] sm:$0xff]
    %v153 = vld [vmem:[#allocation6 + $0x140] sm:$0xff]
    %v154 = vld [vmem:[#allocation6 + $0x148] sm:$0xff]
    %v155 = vld [vmem:[#allocation6 + $0x150] sm:$0xff]
    %v156 = vld [vmem:[#allocation6 + $0x158] sm:$0xff]
    %v157 = vld [vmem:[#allocation6 + $0x160] sm:$0xff]
    %v158 = vld [vmem:[#allocation6 + $0x168] sm:$0xff]
    %v159 = vld [vmem:[#allocation6 + $0x170] sm:$0xff]
    %v160 = vld [vmem:[#allocation6 + $0x178] sm:$0xff]
    %v161 = vld [vmem:[#allocation6 + $0x180] sm:$0xff]
    %v162 = vld [vmem:[#allocation6 + $0x188] sm:$0xff]
    %v163 = vld [vmem:[#allocation6 + $0x190] sm:$0xff]
    %v164 = vld [vmem:[#allocation6 + $0x198] sm:$0xff]
    %v165 = vld [vmem:[#allocation6 + $0x1a0] sm:$0xff]
    %v166 = vld [vmem:[#allocation6 + $0x1a8] sm:$0xff]
    %v167 = vld [vmem:[#allocation6 + $0x1b0] sm:$0xff]
    %v168 = vld [vmem:[#allocation6 + $0x1b8] sm:$0xff]
    %v169 = vld [vmem:[#allocation6 + $0x1c0] sm:$0xff]
    %v170 = vld [vmem:[#allocation6 + $0x1c8] sm:$0xff]
    %v171 = vld [vmem:[#allocation6 + $0x1d0] sm:$0xff]
    %v172 = vld [vmem:[#allocation6 + $0x1d8] sm:$0xff]
    %v173 = vld [vmem:[#allocation6 + $0x1e0] sm:$0xff]
    %v174 = vld [vmem:[#allocation6 + $0x1e8] sm:$0xff]
    %v175 = vld [vmem:[#allocation6 + $0x1f0] sm:$0xff]
    %v176 = vld [vmem:[#allocation6 + $0x1f8] sm:$0xff]
    %v177 = vld [vmem:[#allocation6 + $0x200] sm:$0xff]
    %v178 = vld [vmem:[#allocation6 + $0x208] sm:$0xff]
    %v179 = vld [vmem:[#allocation6 + $0x210] sm:$0xff]
    %v180 = vld [vmem:[#allocation6 + $0x218] sm:$0xff]
    %v181 = vld [vmem:[#allocation6 + $0x220] sm:$0xff]
    %v182 = vld [vmem:[#allocation6 + $0x228] sm:$0xff]
    %v183 = vld [vmem:[#allocation6 + $0x230] sm:$0xff]
    %v184 = vld [vmem:[#allocation6 + $0x238] sm:$0xff]
    %v185 = vld [vmem:[#allocation6 + $0x240] sm:$0xff]
    %v186 = vld [vmem:[#allocation6 + $0x248] sm:$0xff]
    %v187 = vld [vmem:[#allocation6 + $0x250] sm:$0xff]
    %v188 = vld [vmem:[#allocation6 + $0x258] sm:$0xff]
    %v189 = vld [vmem:[#allocation6 + $0x260] sm:$0xff]
    %v190 = vld [vmem:[#allocation6 + $0x268] sm:$0xff]
    %v191 = vld [vmem:[#allocation6 + $0x270] sm:$0xff]
    %v192 = vld [vmem:[#allocation6 + $0x278] sm:$0xff]
    %v193 = vld [vmem:[#allocation6 + $0x280] sm:$0xff]
    %v194 = vld [vmem:[#allocation6 + $0x288] sm:$0xff]
    %v195 = vld [vmem:[#allocation6 + $0x290] sm:$0xff]
    %v196 = vld [vmem:[#allocation6 + $0x298] sm:$0xff]
    %v197 = vld [vmem:[#allocation6 + $0x2a0] sm:$0xff]
    %v198 = vld [vmem:[#allocation6 + $0x2a8] sm:$0xff]
    %v199 = vld [vmem:[#allocation6 + $0x2b0] sm:$0xff]
    %v200 = vld [vmem:[#allocation6 + $0x2b8] sm:$0xff]
    %v201 = vld [vmem:[#allocation6 + $0x2c0] sm:$0xff]
    %v202 = vld [vmem:[#allocation6 + $0x2c8] sm:$0xff]
    %v203 = vld [vmem:[#allocation6 + $0x2d0] sm:$0xff]
    %v204 = vld [vmem:[#allocation6 + $0x2d8] sm:$0xff]
    %v205 = vld [vmem:[#allocation6 + $0x2e0] sm:$0xff]
    %v206 = vld [vmem:[#allocation6 + $0x2e8] sm:$0xff]
    %v207 = vld [vmem:[#allocation6 + $0x2f0] sm:$0xff]
    %v208 = vld [vmem:[#allocation6 + $0x2f8] sm:$0xff]
    %v209 = vld [vmem:[#allocation6 + $0x300] sm:$0xff]
    %v210 = vld [vmem:[#allocation6 + $0x308] sm:$0xff]
    %v211 = vld [vmem:[#allocation6 + $0x310] sm:$0xff]
    %v212 = vld [vmem:[#allocation6 + $0x318] sm:$0xff]
    %v213 = vld [vmem:[#allocation6 + $0x320] sm:$0xff]
    %v214 = vld [vmem:[#allocation6 + $0x328] sm:$0xff]
    %v215 = vld [vmem:[#allocation6 + $0x330] sm:$0xff]
    %v216 = vld [vmem:[#allocation6 + $0x338] sm:$0xff]
    %v217 = vld [vmem:[#allocation6 + $0x340] sm:$0xff]
    %v218 = vld [vmem:[#allocation6 + $0x348] sm:$0xff]
    %v219 = vld [vmem:[#allocation6 + $0x350] sm:$0xff]
    %v220 = vld [vmem:[#allocation6 + $0x358] sm:$0xff]
    %v221 = vld [vmem:[#allocation6 + $0x360] sm:$0xff]
    %v222 = vld [vmem:[#allocation6 + $0x368] sm:$0xff]
    %v223 = vld [vmem:[#allocation6 + $0x370] sm:$0xff]
    %v224 = vld [vmem:[#allocation6 + $0x378] sm:$0xff]
    %v225 = vld [vmem:[#allocation6 + $0x380] sm:$0xff]
    %v226 = vld [vmem:[#allocation6 + $0x388] sm:$0xff]
    %v227 = vld [vmem:[#allocation6 + $0x390] sm:$0xff]
    %v228 = vld [vmem:[#allocation6 + $0x398] sm:$0xff]
    %v229 = vld [vmem:[#allocation6 + $0x3a0] sm:$0xff]
    %v230 = vld [vmem:[#allocation6 + $0x3a8] sm:$0xff]
    %v231 = vld [vmem:[#allocation6 + $0x3b0] sm:$0xff]
    %v232 = vld [vmem:[#allocation6 + $0x3b8] sm:$0xff]
    %v233 = vld [vmem:[#allocation6 + $0x3c0] sm:$0xff]
    %v234 = vld [vmem:[#allocation6 + $0x3c8] sm:$0xff]
    %v235 = vld [vmem:[#allocation6 + $0x3d0] sm:$0xff]
    %v236 = vld [vmem:[#allocation6 + $0x3d8] sm:$0xff]
    %v237 = vld [vmem:[#allocation6 + $0x3e0] sm:$0xff]
    %v238 = vld [vmem:[#allocation6 + $0x3e8] sm:$0xff]
    %v239 = vld [vmem:[#allocation6 + $0x3f0] sm:$0xff]
    %v240 = vld [vmem:[#allocation6 + $0x3f8] sm:$0xff]
    %v369 = vunpack.c.l.b16 %v113
    %v370 = vunpack.c.h.b16 %v113
    %v371 = vunpack.c.l.b16 %v114
    %v372 = vunpack.c.h.b16 %v114
    %v373 = vunpack.c.l.b16 %v115
    %v374 = vunpack.c.h.b16 %v115
    %v375 = vunpack.c.l.b16 %v116
    %v376 = vunpack.c.h.b16 %v116
    %v377 = vunpack.c.l.b16 %v117
    %v378 = vunpack.c.h.b16 %v117
    %v379 = vunpack.c.l.b16 %v118
    %v380 = vunpack.c.h.b16 %v118
    %v381 = vunpack.c.l.b16 %v119
    %v382 = vunpack.c.h.b16 %v119
    %v383 = vunpack.c.l.b16 %v120
    %v384 = vunpack.c.h.b16 %v120
    %v385 = vunpack.c.l.b16 %v121
    %v386 = vunpack.c.h.b16 %v121
    %v387 = vunpack.c.l.b16 %v122
    %v388 = vunpack.c.h.b16 %v122
    %v389 = vunpack.c.l.b16 %v123
    %v390 = vunpack.c.h.b16 %v123
    %v391 = vunpack.c.l.b16 %v124
    %v392 = vunpack.c.h.b16 %v124
    %v393 = vunpack.c.l.b16 %v125
    %v394 = vunpack.c.h.b16 %v125
    %v395 = vunpack.c.l.b16 %v126
    %v396 = vunpack.c.h.b16 %v126
    %v397 = vunpack.c.l.b16 %v127
    %v398 = vunpack.c.h.b16 %v127
    %v399 = vunpack.c.l.b16 %v128
    %v400 = vunpack.c.h.b16 %v128
    %v401 = vunpack.c.l.b16 %v129
    %v402 = vunpack.c.h.b16 %v129
    %v403 = vunpack.c.l.b16 %v130
    %v404 = vunpack.c.h.b16 %v130
    %v405 = vunpack.c.l.b16 %v131
    %v406 = vunpack.c.h.b16 %v131
    %v407 = vunpack.c.l.b16 %v132
    %v408 = vunpack.c.h.b16 %v132
    %v409 = vunpack.c.l.b16 %v133
    %v410 = vunpack.c.h.b16 %v133
    %v411 = vunpack.c.l.b16 %v134
    %v412 = vunpack.c.h.b16 %v134
    %v413 = vunpack.c.l.b16 %v135
    %v414 = vunpack.c.h.b16 %v135
    %v415 = vunpack.c.l.b16 %v136
    %v416 = vunpack.c.h.b16 %v136
    %v417 = vunpack.c.l.b16 %v137
    %v418 = vunpack.c.h.b16 %v137
    %v419 = vunpack.c.l.b16 %v138
    %v420 = vunpack.c.h.b16 %v138
    %v421 = vunpack.c.l.b16 %v139
    %v422 = vunpack.c.h.b16 %v139
    %v423 = vunpack.c.l.b16 %v140
    %v424 = vunpack.c.h.b16 %v140
    %v425 = vunpack.c.l.b16 %v141
    %v426 = vunpack.c.h.b16 %v141
    %v427 = vunpack.c.l.b16 %v142
    %v428 = vunpack.c.h.b16 %v142
    %v429 = vunpack.c.l.b16 %v143
    %v430 = vunpack.c.h.b16 %v143
    %v431 = vunpack.c.l.b16 %v144
    %v432 = vunpack.c.h.b16 %v144
    %v433 = vunpack.c.l.b16 %v145
    %v434 = vunpack.c.h.b16 %v145
    %v435 = vunpack.c.l.b16 %v146
    %v436 = vunpack.c.h.b16 %v146
    %v437 = vunpack.c.l.b16 %v147
    %v438 = vunpack.c.h.b16 %v147
    %v439 = vunpack.c.l.b16 %v148
    %v440 = vunpack.c.h.b16 %v148
    %v441 = vunpack.c.l.b16 %v149
    %v442 = vunpack.c.h.b16 %v149
    %v443 = vunpack.c.l.b16 %v150
    %v444 = vunpack.c.h.b16 %v150
    %v445 = vunpack.c.l.b16 %v151
    %v446 = vunpack.c.h.b16 %v151
    %v447 = vunpack.c.l.b16 %v152
    %v448 = vunpack.c.h.b16 %v152
    %v449 = vunpack.c.l.b16 %v153
    %v450 = vunpack.c.h.b16 %v153
    %v451 = vunpack.c.l.b16 %v154
    %v452 = vunpack.c.h.b16 %v154
    %v453 = vunpack.c.l.b16 %v155
    %v454 = vunpack.c.h.b16 %v155
    %v455 = vunpack.c.l.b16 %v156
    %v456 = vunpack.c.h.b16 %v156
    %v457 = vunpack.c.l.b16 %v157
    %v458 = vunpack.c.h.b16 %v157
    %v459 = vunpack.c.l.b16 %v158
    %v460 = vunpack.c.h.b16 %v158
    %v461 = vunpack.c.l.b16 %v159
    %v462 = vunpack.c.h.b16 %v159
    %v463 = vunpack.c.l.b16 %v160
    %v464 = vunpack.c.h.b16 %v160
    %v465 = vunpack.c.l.b16 %v161
    %v466 = vunpack.c.h.b16 %v161
    %v467 = vunpack.c.l.b16 %v162
    %v468 = vunpack.c.h.b16 %v162
    %v469 = vunpack.c.l.b16 %v163
    %v470 = vunpack.c.h.b16 %v163
    %v471 = vunpack.c.l.b16 %v164
    %v472 = vunpack.c.h.b16 %v164
    %v473 = vunpack.c.l.b16 %v165
    %v474 = vunpack.c.h.b16 %v165
    %v475 = vunpack.c.l.b16 %v166
    %v476 = vunpack.c.h.b16 %v166
    %v477 = vunpack.c.l.b16 %v167
    %v478 = vunpack.c.h.b16 %v167
    %v479 = vunpack.c.l.b16 %v168
    %v480 = vunpack.c.h.b16 %v168
    %v481 = vunpack.c.l.b16 %v169
    %v482 = vunpack.c.h.b16 %v169
    %v483 = vunpack.c.l.b16 %v170
    %v484 = vunpack.c.h.b16 %v170
    %v485 = vunpack.c.l.b16 %v171
    %v486 = vunpack.c.h.b16 %v171
    %v487 = vunpack.c.l.b16 %v172
    %v488 = vunpack.c.h.b16 %v172
    %v489 = vunpack.c.l.b16 %v173
    %v490 = vunpack.c.h.b16 %v173
    %v491 = vunpack.c.l.b16 %v174
    %v492 = vunpack.c.h.b16 %v174
    %v493 = vunpack.c.l.b16 %v175
    %v494 = vunpack.c.h.b16 %v175
    %v495 = vunpack.c.l.b16 %v176
    %v496 = vunpack.c.h.b16 %v176
    %v497 = vunpack.c.l.b16 %v177
    %v498 = vunpack.c.h.b16 %v177
    %v499 = vunpack.c.l.b16 %v178
    %v500 = vunpack.c.h.b16 %v178
    %v501 = vunpack.c.l.b16 %v179
    %v502 = vunpack.c.h.b16 %v179
    %v503 = vunpack.c.l.b16 %v180
    %v504 = vunpack.c.h.b16 %v180
    %v505 = vunpack.c.l.b16 %v181
    %v506 = vunpack.c.h.b16 %v181
    %v507 = vunpack.c.l.b16 %v182
    %v508 = vunpack.c.h.b16 %v182
    %v509 = vunpack.c.l.b16 %v183
    %v510 = vunpack.c.h.b16 %v183
    %v511 = vunpack.c.l.b16 %v184
    %v512 = vunpack.c.h.b16 %v184
    %v513 = vunpack.c.l.b16 %v185
    %v514 = vunpack.c.h.b16 %v185
    %v515 = vunpack.c.l.b16 %v186
    %v516 = vunpack.c.h.b16 %v186
    %v517 = vunpack.c.l.b16 %v187
    %v518 = vunpack.c.h.b16 %v187
    %v519 = vunpack.c.l.b16 %v188
    %v520 = vunpack.c.h.b16 %v188
    %v521 = vunpack.c.l.b16 %v189
    %v522 = vunpack.c.h.b16 %v189
    %v523 = vunpack.c.l.b16 %v190
    %v524 = vunpack.c.h.b16 %v190
    %v525 = vunpack.c.l.b16 %v191
    %v526 = vunpack.c.h.b16 %v191
    %v527 = vunpack.c.l.b16 %v192
    %v528 = vunpack.c.h.b16 %v192
    %v529 = vunpack.c.l.b16 %v193
    %v530 = vunpack.c.h.b16 %v193
    %v531 = vunpack.c.l.b16 %v194
    %v532 = vunpack.c.h.b16 %v194
    %v533 = vunpack.c.l.b16 %v195
    %v534 = vunpack.c.h.b16 %v195
    %v535 = vunpack.c.l.b16 %v196
    %v536 = vunpack.c.h.b16 %v196
    %v537 = vunpack.c.l.b16 %v197
    %v538 = vunpack.c.h.b16 %v197
    %v539 = vunpack.c.l.b16 %v198
    %v540 = vunpack.c.h.b16 %v198
    %v541 = vunpack.c.l.b16 %v199
    %v542 = vunpack.c.h.b16 %v199
    %v543 = vunpack.c.l.b16 %v200
    %v544 = vunpack.c.h.b16 %v200
    %v545 = vunpack.c.l.b16 %v201
    %v546 = vunpack.c.h.b16 %v201
    %v547 = vunpack.c.l.b16 %v202
    %v548 = vunpack.c.h.b16 %v202
    %v549 = vunpack.c.l.b16 %v203
    %v550 = vunpack.c.h.b16 %v203
    %v551 = vunpack.c.l.b16 %v204
    %v552 = vunpack.c.h.b16 %v204
    %v553 = vunpack.c.l.b16 %v205
    %v554 = vunpack.c.h.b16 %v205
    %v555 = vunpack.c.l.b16 %v206
    %v556 = vunpack.c.h.b16 %v206
    %v557 = vunpack.c.l.b16 %v207
    %v558 = vunpack.c.h.b16 %v207
    %v559 = vunpack.c.l.b16 %v208
    %v560 = vunpack.c.h.b16 %v208
    %v561 = vunpack.c.l.b16 %v209
    %v562 = vunpack.c.h.b16 %v209
    %v563 = vunpack.c.l.b16 %v210
    %v564 = vunpack.c.h.b16 %v210
    %v565 = vunpack.c.l.b16 %v211
    %v566 = vunpack.c.h.b16 %v211
    %v567 = vunpack.c.l.b16 %v212
    %v568 = vunpack.c.h.b16 %v212
    %v569 = vunpack.c.l.b16 %v213
    %v570 = vunpack.c.h.b16 %v213
    %v571 = vunpack.c.l.b16 %v214
    %v572 = vunpack.c.h.b16 %v214
    %v573 = vunpack.c.l.b16 %v215
    %v574 = vunpack.c.h.b16 %v215
    %v575 = vunpack.c.l.b16 %v216
    %v576 = vunpack.c.h.b16 %v216
    %v577 = vunpack.c.l.b16 %v217
    %v578 = vunpack.c.h.b16 %v217
    %v579 = vunpack.c.l.b16 %v218
    %v580 = vunpack.c.h.b16 %v218
    %v581 = vunpack.c.l.b16 %v219
    %v582 = vunpack.c.h.b16 %v219
    %v583 = vunpack.c.l.b16 %v220
    %v584 = vunpack.c.h.b16 %v220
    %v585 = vunpack.c.l.b16 %v221
    %v586 = vunpack.c.h.b16 %v221
    %v587 = vunpack.c.l.b16 %v222
    %v588 = vunpack.c.h.b16 %v222
    %v589 = vunpack.c.l.b16 %v223
    %v590 = vunpack.c.h.b16 %v223
    %v591 = vunpack.c.l.b16 %v224
    %v592 = vunpack.c.h.b16 %v224
    %v593 = vunpack.c.l.b16 %v225
    %v594 = vunpack.c.h.b16 %v225
    %v595 = vunpack.c.l.b16 %v226
    %v596 = vunpack.c.h.b16 %v226
    %v597 = vunpack.c.l.b16 %v227
    %v598 = vunpack.c.h.b16 %v227
    %v599 = vunpack.c.l.b16 %v228
    %v600 = vunpack.c.h.b16 %v228
    %v601 = vunpack.c.l.b16 %v229
    %v602 = vunpack.c.h.b16 %v229
    %v603 = vunpack.c.l.b16 %v230
    %v604 = vunpack.c.h.b16 %v230
    %v605 = vunpack.c.l.b16 %v231
    %v606 = vunpack.c.h.b16 %v231
    %v607 = vunpack.c.l.b16 %v232
    %v608 = vunpack.c.h.b16 %v232
    %v609 = vunpack.c.l.b16 %v233
    %v610 = vunpack.c.h.b16 %v233
    %v611 = vunpack.c.l.b16 %v234
    %v612 = vunpack.c.h.b16 %v234
    %v613 = vunpack.c.l.b16 %v235
    %v614 = vunpack.c.h.b16 %v235
    %v615 = vunpack.c.l.b16 %v236
    %v616 = vunpack.c.h.b16 %v236
    %v617 = vunpack.c.l.b16 %v237
    %v618 = vunpack.c.h.b16 %v237
    %v619 = vunpack.c.l.b16 %v238
    %v620 = vunpack.c.h.b16 %v238
    %v621 = vunpack.c.l.b16 %v239
    %v622 = vunpack.c.h.b16 %v239
    %v623 = vunpack.c.l.b16 %v240
    %v624 = vunpack.c.h.b16 %v240
    %v625 = vpack.c.b16 %v377, %v369
    %v626 = vpack.c.b16 %v378, %v370
    %v627 = vpack.c.b16 %v379, %v371
    %v628 = vpack.c.b16 %v380, %v372
    %v629 = vpack.c.b16 %v381, %v373
    %v630 = vpack.c.b16 %v382, %v374
    %v631 = vpack.c.b16 %v383, %v375
    %v632 = vpack.c.b16 %v384, %v376
    %v633 = vpack.c.b16 %v393, %v385
    %v634 = vpack.c.b16 %v394, %v386
    %v635 = vpack.c.b16 %v395, %v387
    %v636 = vpack.c.b16 %v396, %v388
    %v637 = vpack.c.b16 %v397, %v389
    %v638 = vpack.c.b16 %v398, %v390
    %v639 = vpack.c.b16 %v399, %v391
    %v640 = vpack.c.b16 %v400, %v392
    %v641 = vpack.c.b16 %v409, %v401
    %v642 = vpack.c.b16 %v410, %v402
    %v643 = vpack.c.b16 %v411, %v403
    %v644 = vpack.c.b16 %v412, %v404
    %v645 = vpack.c.b16 %v413, %v405
    %v646 = vpack.c.b16 %v414, %v406
    %v647 = vpack.c.b16 %v415, %v407
    %v648 = vpack.c.b16 %v416, %v408
    %v649 = vpack.c.b16 %v425, %v417
    %v650 = vpack.c.b16 %v426, %v418
    %v651 = vpack.c.b16 %v427, %v419
    %v652 = vpack.c.b16 %v428, %v420
    %v653 = vpack.c.b16 %v429, %v421
    %v654 = vpack.c.b16 %v430, %v422
    %v655 = vpack.c.b16 %v431, %v423
    %v656 = vpack.c.b16 %v432, %v424
    %v657 = vpack.c.b16 %v441, %v433
    %v658 = vpack.c.b16 %v442, %v434
    %v659 = vpack.c.b16 %v443, %v435
    %v660 = vpack.c.b16 %v444, %v436
    %v661 = vpack.c.b16 %v445, %v437
    %v662 = vpack.c.b16 %v446, %v438
    %v663 = vpack.c.b16 %v447, %v439
    %v664 = vpack.c.b16 %v448, %v440
    %v665 = vpack.c.b16 %v457, %v449
    %v666 = vpack.c.b16 %v458, %v450
    %v667 = vpack.c.b16 %v459, %v451
    %v668 = vpack.c.b16 %v460, %v452
    %v669 = vpack.c.b16 %v461, %v453
    %v670 = vpack.c.b16 %v462, %v454
    %v671 = vpack.c.b16 %v463, %v455
    %v672 = vpack.c.b16 %v464, %v456
    %v673 = vpack.c.b16 %v473, %v465
    %v674 = vpack.c.b16 %v474, %v466
    %v675 = vpack.c.b16 %v475, %v467
    %v676 = vpack.c.b16 %v476, %v468
    %v677 = vpack.c.b16 %v477, %v469
    %v678 = vpack.c.b16 %v478, %v470
    %v679 = vpack.c.b16 %v479, %v471
    %v680 = vpack.c.b16 %v480, %v472
    %v681 = vpack.c.b16 %v489, %v481
    %v682 = vpack.c.b16 %v490, %v482
    %v683 = vpack.c.b16 %v491, %v483
    %v684 = vpack.c.b16 %v492, %v484
    %v685 = vpack.c.b16 %v493, %v485
    %v686 = vpack.c.b16 %v494, %v486
    %v687 = vpack.c.b16 %v495, %v487
    %v688 = vpack.c.b16 %v496, %v488
    %v689 = vpack.c.b16 %v505, %v497
    %v690 = vpack.c.b16 %v506, %v498
    %v691 = vpack.c.b16 %v507, %v499
    %v692 = vpack.c.b16 %v508, %v500
    %v693 = vpack.c.b16 %v509, %v501
    %v694 = vpack.c.b16 %v510, %v502
    %v695 = vpack.c.b16 %v511, %v503
    %v696 = vpack.c.b16 %v512, %v504
    %v697 = vpack.c.b16 %v521, %v513
    %v698 = vpack.c.b16 %v522, %v514
    %v699 = vpack.c.b16 %v523, %v515
    %v700 = vpack.c.b16 %v524, %v516
    %v701 = vpack.c.b16 %v525, %v517
    %v702 = vpack.c.b16 %v526, %v518
    %v703 = vpack.c.b16 %v527, %v519
    %v704 = vpack.c.b16 %v528, %v520
    %v705 = vpack.c.b16 %v537, %v529
    %v706 = vpack.c.b16 %v538, %v530
    %v707 = vpack.c.b16 %v539, %v531
    %v708 = vpack.c.b16 %v540, %v532
    %v709 = vpack.c.b16 %v541, %v533
    %v710 = vpack.c.b16 %v542, %v534
    %v711 = vpack.c.b16 %v543, %v535
    %v712 = vpack.c.b16 %v544, %v536
    %v713 = vpack.c.b16 %v553, %v545
    %v714 = vpack.c.b16 %v554, %v546
    %v715 = vpack.c.b16 %v555, %v547
    %v716 = vpack.c.b16 %v556, %v548
    %v717 = vpack.c.b16 %v557, %v549
    %v718 = vpack.c.b16 %v558, %v550
    %v719 = vpack.c.b16 %v559, %v551
    %v720 = vpack.c.b16 %v560, %v552
    %v721 = vpack.c.b16 %v569, %v561
    %v722 = vpack.c.b16 %v570, %v562
    %v723 = vpack.c.b16 %v571, %v563
    %v724 = vpack.c.b16 %v572, %v564
    %v725 = vpack.c.b16 %v573, %v565
    %v726 = vpack.c.b16 %v574, %v566
    %v727 = vpack.c.b16 %v575, %v567
    %v728 = vpack.c.b16 %v576, %v568
    %v729 = vpack.c.b16 %v585, %v577
    %v730 = vpack.c.b16 %v586, %v578
    %v731 = vpack.c.b16 %v587, %v579
    %v732 = vpack.c.b16 %v588, %v580
    %v733 = vpack.c.b16 %v589, %v581
    %v734 = vpack.c.b16 %v590, %v582
    %v735 = vpack.c.b16 %v591, %v583
    %v736 = vpack.c.b16 %v592, %v584
    %v737 = vpack.c.b16 %v601, %v593
    %v738 = vpack.c.b16 %v602, %v594
    %v739 = vpack.c.b16 %v603, %v595
    %v740 = vpack.c.b16 %v604, %v596
    %v741 = vpack.c.b16 %v605, %v597
    %v742 = vpack.c.b16 %v606, %v598
    %v743 = vpack.c.b16 %v607, %v599
    %v744 = vpack.c.b16 %v608, %v600
    %v745 = vpack.c.b16 %v617, %v609
    %v746 = vpack.c.b16 %v618, %v610
    %v747 = vpack.c.b16 %v619, %v611
    %v748 = vpack.c.b16 %v620, %v612
    %v749 = vpack.c.b16 %v621, %v613
    %v750 = vpack.c.b16 %v622, %v614
    %v751 = vpack.c.b16 %v623, %v615
    %v752 = vpack.c.b16 %v624, %v616
    %v882 = vcombine.high %v80, %v80
    %v884 = vunpack.c.l.s4 1966171168
    %v885 = vunpack.c.0.s8 %v884
    %v886 = vlaneseq
    %v887 = vshrl.u32 %v886, 7
    %v888 = vsub.s32 %v885, %v887
    %v889 = vrot.slane %v80, %v888
    %v891 = vunpack.c.l.s4 1966171168
    %v892 = vunpack.c.0.s8 %v891
    %v893 = vlaneseq
    %v894 = vshrl.u32 %v893, 7
    %v895 = vsub.s32 %v892, %v894
    %v896 = vrot.slane %v882, %v895
    %v897 = vcombine.high %v889, %v889
    %v898 = vcombine.high %v896, %v896
    %v900 = vunpack.c.l.s4 1966171168
    %v901 = vunpack.c.0.s8 %v900
    %v902 = vlaneseq
    %v903 = vshrl.u32 %v902, 7
    %v904 = vsub.s32 %v901, %v903
    %v905 = vrot.slane %v889, %v904
    %v907 = vunpack.c.l.s4 1966171168
    %v908 = vunpack.c.0.s8 %v907
    %v909 = vlaneseq
    %v910 = vshrl.u32 %v909, 7
    %v911 = vsub.s32 %v908, %v910
    %v912 = vrot.slane %v896, %v911
    %v914 = vunpack.c.l.s4 1966171168
    %v915 = vunpack.c.0.s8 %v914
    %v916 = vlaneseq
    %v917 = vshrl.u32 %v916, 7
    %v918 = vsub.s32 %v915, %v917
    %v919 = vrot.slane %v897, %v918
    %v921 = vunpack.c.l.s4 1966171168
    %v922 = vunpack.c.0.s8 %v921
    %v923 = vlaneseq
    %v924 = vshrl.u32 %v923, 7
    %v925 = vsub.s32 %v922, %v924
    %v926 = vrot.slane %v898, %v925
    %v927 = vcombine.high %v905, %v905
    %v928 = vcombine.high %v912, %v912
    %v929 = vcombine.high %v919, %v919
    %v930 = vcombine.high %v926, %v926
    %939 = vmatprep.subr.bf16.mxu0 0
    %940 = vmatpush1.bf16.xpose.msra.mxu0 0
    %941 = vmatprep.subr.bf16.mxu0 0
    %942 = vmatpush1.bf16.xpose.msra.mxu0 0
    %943 = vmatprep.subr.bf16.mxu0 0
    %944 = vmatpush1.bf16.xpose.msra.mxu0 0
    %945 = vmatprep.subr.bf16.mxu0 0
    %946 = vmatpush1.bf16.xpose.msra.mxu0 0
    %947 = vmatprep.subr.bf16.mxu0 0
    %948 = vmatpush1.bf16.xpose.msra.mxu0 0
    %949 = vmatprep.subr.bf16.mxu0 0
    %950 = vmatpush1.bf16.xpose.msra.mxu0 0
    %951 = vmatprep.subr.bf16.mxu0 0
    %952 = vmatpush1.bf16.xpose.msra.mxu0 0
    %953 = vmatprep.subr.bf16.mxu0 %v919
    %954 = vmatpush1.bf16.xpose.msra.mxu0 %v905
    %955 = vmatprep.subr.bf16.mxu0 0
    %956 = vmatpush2.bf16.xpose.msra.mxu0 0
    %957 = vmatprep.subr.bf16.mxu0 0
    %958 = vmatpush2.bf16.xpose.msra.mxu0 0
    %959 = vmatprep.subr.bf16.mxu0 0
    %960 = vmatpush2.bf16.xpose.msra.mxu0 0
    %961 = vmatprep.subr.bf16.mxu0 0
    %962 = vmatpush2.bf16.xpose.msra.mxu0 0
    %963 = vmatprep.subr.bf16.mxu0 0
    %964 = vmatpush2.bf16.xpose.msra.mxu0 0
    %965 = vmatprep.subr.bf16.mxu0 0
    %966 = vmatpush2.bf16.xpose.msra.mxu0 0
    %967 = vmatprep.subr.bf16.mxu0 0
    %968 = vmatpush2.bf16.xpose.msra.mxu0 0
    %969 = vmatprep.subr.bf16.mxu0 0
    %970 = vmatpush2.bf16.xpose.msra.mxu0 0
    %971 = vmatprep.mubr.bf16.mxu0 %v626
    %972 = vmatmul.mubr.bf16.gmra.mxu0 %v625
    %v973 = vpop.f32.mrf.mxu0
    %v974 = vadd.f32 0.0, %v973
    %v975 = vpop.f32.mrf.mxu0
    %v976 = vpop.f32.mrf.mxu0
    %v977 = vadd.f32 0.0, %v976
    %v978 = vpop.f32.mrf.mxu0
    %979 = vmatprep.mubr.bf16.mxu0 %v634
    %980 = vmatmul.mubr.bf16.gmra.mxu0 %v633
    %v981 = vpop.f32.mrf.mxu0
    %v982 = vadd.f32 0.0, %v981
    %v983 = vpop.f32.mrf.mxu0
    %v984 = vpop.f32.mrf.mxu0
    %v985 = vadd.f32 0.0, %v984
    %v986 = vpop.f32.mrf.mxu0
    %987 = vmatprep.mubr.bf16.mxu0 %v642
    %988 = vmatmul.mubr.bf16.gmra.mxu0 %v641
    %v989 = vpop.f32.mrf.mxu0
    %v990 = vadd.f32 0.0, %v989
    %v991 = vpop.f32.mrf.mxu0
    %v992 = vpop.f32.mrf.mxu0
    %v993 = vadd.f32 0.0, %v992
    %v994 = vpop.f32.mrf.mxu0
    %995 = vmatprep.mubr.bf16.mxu0 %v650
    %996 = vmatmul.mubr.bf16.gmra.mxu0 %v649
    %v997 = vpop.f32.mrf.mxu0
    %v998 = vadd.f32 0.0, %v997
    %v999 = vpop.f32.mrf.mxu0
    %v1000 = vpop.f32.mrf.mxu0
    %v1001 = vadd.f32 0.0, %v1000
    %v1002 = vpop.f32.mrf.mxu0
    %1003 = vmatprep.mubr.bf16.mxu0 %v658
    %1004 = vmatmul.mubr.bf16.gmra.mxu0 %v657
    %v1005 = vpop.f32.mrf.mxu0
    %v1006 = vadd.f32 0.0, %v1005
    %v1007 = vpop.f32.mrf.mxu0
    %v1008 = vpop.f32.mrf.mxu0
    %v1009 = vadd.f32 0.0, %v1008
    %v1010 = vpop.f32.mrf.mxu0
    %1011 = vmatprep.mubr.bf16.mxu0 %v666
    %1012 = vmatmul.mubr.bf16.gmra.mxu0 %v665
    %v1013 = vpop.f32.mrf.mxu0
    %v1014 = vadd.f32 0.0, %v1013
    %v1015 = vpop.f32.mrf.mxu0
    %v1016 = vpop.f32.mrf.mxu0
    %v1017 = vadd.f32 0.0, %v1016
    %v1018 = vpop.f32.mrf.mxu0
    %1019 = vmatprep.mubr.bf16.mxu0 %v674
    %1020 = vmatmul.mubr.bf16.gmra.mxu0 %v673
    %v1021 = vpop.f32.mrf.mxu0
    %v1022 = vadd.f32 0.0, %v1021
    %v1023 = vpop.f32.mrf.mxu0
    %v1024 = vpop.f32.mrf.mxu0
    %v1025 = vadd.f32 0.0, %v1024
    %v1026 = vpop.f32.mrf.mxu0
    %1027 = vmatprep.mubr.bf16.mxu0 %v682
    %1028 = vmatmul.mubr.bf16.gmra.mxu0 %v681
    %v1029 = vpop.f32.mrf.mxu0
    %v1030 = vadd.f32 0.0, %v1029
    %v1031 = vpop.f32.mrf.mxu0
    %v1032 = vpop.f32.mrf.mxu0
    %v1033 = vadd.f32 0.0, %v1032
    %v1034 = vpop.f32.mrf.mxu0
    %1035 = vmatprep.mubr.bf16.mxu0 %v690
    %1036 = vmatmul.mubr.bf16.gmra.mxu0 %v689
    %v1037 = vpop.f32.mrf.mxu0
    %v1038 = vadd.f32 0.0, %v1037
    %v1039 = vpop.f32.mrf.mxu0
    %v1040 = vpop.f32.mrf.mxu0
    %v1041 = vadd.f32 0.0, %v1040
    %v1042 = vpop.f32.mrf.mxu0
    %1043 = vmatprep.mubr.bf16.mxu0 %v698
    %1044 = vmatmul.mubr.bf16.gmra.mxu0 %v697
    %v1045 = vpop.f32.mrf.mxu0
    %v1046 = vadd.f32 0.0, %v1045
    %v1047 = vpop.f32.mrf.mxu0
    %v1048 = vpop.f32.mrf.mxu0
    %v1049 = vadd.f32 0.0, %v1048
    %v1050 = vpop.f32.mrf.mxu0
    %1051 = vmatprep.mubr.bf16.mxu0 %v706
    %1052 = vmatmul.mubr.bf16.gmra.mxu0 %v705
    %v1053 = vpop.f32.mrf.mxu0
    %v1054 = vadd.f32 0.0, %v1053
    %v1055 = vpop.f32.mrf.mxu0
    %v1056 = vpop.f32.mrf.mxu0
    %v1057 = vadd.f32 0.0, %v1056
    %v1058 = vpop.f32.mrf.mxu0
    %1059 = vmatprep.mubr.bf16.mxu0 %v714
    %1060 = vmatmul.mubr.bf16.gmra.mxu0 %v713
    %v1061 = vpop.f32.mrf.mxu0
    %v1062 = vadd.f32 0.0, %v1061
    %v1063 = vpop.f32.mrf.mxu0
    %v1064 = vpop.f32.mrf.mxu0
    %v1065 = vadd.f32 0.0, %v1064
    %v1066 = vpop.f32.mrf.mxu0
    %1067 = vmatprep.mubr.bf16.mxu0 %v722
    %1068 = vmatmul.mubr.bf16.gmra.mxu0 %v721
    %v1069 = vpop.f32.mrf.mxu0
    %v1070 = vadd.f32 0.0, %v1069
    %v1071 = vpop.f32.mrf.mxu0
    %v1072 = vpop.f32.mrf.mxu0
    %v1073 = vadd.f32 0.0, %v1072
    %v1074 = vpop.f32.mrf.mxu0
    %1075 = vmatprep.mubr.bf16.mxu0 %v730
    %1076 = vmatmul.mubr.bf16.gmra.mxu0 %v729
    %v1077 = vpop.f32.mrf.mxu0
    %v1078 = vadd.f32 0.0, %v1077
    %v1079 = vpop.f32.mrf.mxu0
    %v1080 = vpop.f32.mrf.mxu0
    %v1081 = vadd.f32 0.0, %v1080
    %v1082 = vpop.f32.mrf.mxu0
    %1083 = vmatprep.mubr.bf16.mxu0 %v738
    %1084 = vmatmul.mubr.bf16.gmra.mxu0 %v737
    %v1085 = vpop.f32.mrf.mxu0
    %v1086 = vadd.f32 0.0, %v1085
    %v1087 = vpop.f32.mrf.mxu0
    %v1088 = vpop.f32.mrf.mxu0
    %v1089 = vadd.f32 0.0, %v1088
    %v1090 = vpop.f32.mrf.mxu0
    %1091 = vmatprep.mubr.bf16.mxu0 %v746
    %1092 = vmatmul.mubr.bf16.gmra.mxu0 %v745
    %v1093 = vpop.f32.mrf.mxu0
    %v1094 = vadd.f32 0.0, %v1093
    %v1095 = vpop.f32.mrf.mxu0
    %v1096 = vpop.f32.mrf.mxu0
    %v1097 = vadd.f32 0.0, %v1096
    %v1098 = vpop.f32.mrf.mxu0
    %1099 = vdwg.mxu0
    %1100 = vmatprep.subr.bf16.mxu0 0
    %1101 = vmatpush1.bf16.xpose.msra.mxu0 0
    %1102 = vmatprep.subr.bf16.mxu0 0
    %1103 = vmatpush1.bf16.xpose.msra.mxu0 0
    %1104 = vmatprep.subr.bf16.mxu0 0
    %1105 = vmatpush1.bf16.xpose.msra.mxu0 0
    %1106 = vmatprep.subr.bf16.mxu0 0
    %1107 = vmatpush1.bf16.xpose.msra.mxu0 0
    %1108 = vmatprep.subr.bf16.mxu0 0
    %1109 = vmatpush1.bf16.xpose.msra.mxu0 0
    %1110 = vmatprep.subr.bf16.mxu0 0
    %1111 = vmatpush1.bf16.xpose.msra.mxu0 0
    %1112 = vmatprep.subr.bf16.mxu0 0
    %1113 = vmatpush1.bf16.xpose.msra.mxu0 0
    %1114 = vmatprep.subr.bf16.mxu0 %v929
    %1115 = vmatpush1.bf16.xpose.msra.mxu0 %v927
    %1116 = vmatprep.subr.bf16.mxu0 0
    %1117 = vmatpush2.bf16.xpose.msra.mxu0 0
    %1118 = vmatprep.subr.bf16.mxu0 0
    %1119 = vmatpush2.bf16.xpose.msra.mxu0 0
    %1120 = vmatprep.subr.bf16.mxu0 0
    %1121 = vmatpush2.bf16.xpose.msra.mxu0 0
    %1122 = vmatprep.subr.bf16.mxu0 0
    %1123 = vmatpush2.bf16.xpose.msra.mxu0 0
    %1124 = vmatprep.subr.bf16.mxu0 0
    %1125 = vmatpush2.bf16.xpose.msra.mxu0 0
    %1126 = vmatprep.subr.bf16.mxu0 0
    %1127 = vmatpush2.bf16.xpose.msra.mxu0 0
    %1128 = vmatprep.subr.bf16.mxu0 0
    %1129 = vmatpush2.bf16.xpose.msra.mxu0 0
    %1130 = vmatprep.subr.bf16.mxu0 0
    %1131 = vmatpush2.bf16.xpose.msra.mxu0 0
    %1132 = vmatprep.mubr.bf16.mxu0 %v628
    %1133 = vmatmul.mubr.bf16.gmra.mxu0 %v627
    %v1134 = vpop.f32.mrf.mxu0
    %v1135 = vadd.f32 %v974, %v1134
    %v1136 = vpop.f32.mrf.mxu0
    %v1137 = vpop.f32.mrf.mxu0
    %v1138 = vadd.f32 %v977, %v1137
    %v1139 = vpop.f32.mrf.mxu0
    %1140 = vmatprep.mubr.bf16.mxu0 %v636
    %1141 = vmatmul.mubr.bf16.gmra.mxu0 %v635
    %v1142 = vpop.f32.mrf.mxu0
    %v1143 = vadd.f32 %v982, %v1142
    %v1144 = vpop.f32.mrf.mxu0
    %v1145 = vpop.f32.mrf.mxu0
    %v1146 = vadd.f32 %v985, %v1145
    %v1147 = vpop.f32.mrf.mxu0
    %1148 = vmatprep.mubr.bf16.mxu0 %v644
    %1149 = vmatmul.mubr.bf16.gmra.mxu0 %v643
    %v1150 = vpop.f32.mrf.mxu0
    %v1151 = vadd.f32 %v990, %v1150
    %v1152 = vpop.f32.mrf.mxu0
    %v1153 = vpop.f32.mrf.mxu0
    %v1154 = vadd.f32 %v993, %v1153
    %v1155 = vpop.f32.mrf.mxu0
    %1156 = vmatprep.mubr.bf16.mxu0 %v652
    %1157 = vmatmul.mubr.bf16.gmra.mxu0 %v651
    %v1158 = vpop.f32.mrf.mxu0
    %v1159 = vadd.f32 %v998, %v1158
    %v1160 = vpop.f32.mrf.mxu0
    %v1161 = vpop.f32.mrf.mxu0
    %v1162 = vadd.f32 %v1001, %v1161
    %v1163 = vpop.f32.mrf.mxu0
    %1164 = vmatprep.mubr.bf16.mxu0 %v660
    %1165 = vmatmul.mubr.bf16.gmra.mxu0 %v659
    %v1166 = vpop.f32.mrf.mxu0
    %v1167 = vadd.f32 %v1006, %v1166
    %v1168 = vpop.f32.mrf.mxu0
    %v1169 = vpop.f32.mrf.mxu0
    %v1170 = vadd.f32 %v1009, %v1169
    %v1171 = vpop.f32.mrf.mxu0
    %1172 = vmatprep.mubr.bf16.mxu0 %v668
    %1173 = vmatmul.mubr.bf16.gmra.mxu0 %v667
    %v1174 = vpop.f32.mrf.mxu0
    %v1175 = vadd.f32 %v1014, %v1174
    %v1176 = vpop.f32.mrf.mxu0
    %v1177 = vpop.f32.mrf.mxu0
    %v1178 = vadd.f32 %v1017, %v1177
    %v1179 = vpop.f32.mrf.mxu0
    %1180 = vmatprep.mubr.bf16.mxu0 %v676
    %1181 = vmatmul.mubr.bf16.gmra.mxu0 %v675
    %v1182 = vpop.f32.mrf.mxu0
    %v1183 = vadd.f32 %v1022, %v1182
    %v1184 = vpop.f32.mrf.mxu0
    %v1185 = vpop.f32.mrf.mxu0
    %v1186 = vadd.f32 %v1025, %v1185
    %v1187 = vpop.f32.mrf.mxu0
    %1188 = vmatprep.mubr.bf16.mxu0 %v684
    %1189 = vmatmul.mubr.bf16.gmra.mxu0 %v683
    %v1190 = vpop.f32.mrf.mxu0
    %v1191 = vadd.f32 %v1030, %v1190
    %v1192 = vpop.f32.mrf.mxu0
    %v1193 = vpop.f32.mrf.mxu0
    %v1194 = vadd.f32 %v1033, %v1193
    %v1195 = vpop.f32.mrf.mxu0
    %1196 = vmatprep.mubr.bf16.mxu0 %v692
    %1197 = vmatmul.mubr.bf16.gmra.mxu0 %v691
    %v1198 = vpop.f32.mrf.mxu0
    %v1199 = vadd.f32 %v1038, %v1198
    %v1200 = vpop.f32.mrf.mxu0
    %v1201 = vpop.f32.mrf.mxu0
    %v1202 = vadd.f32 %v1041, %v1201
    %v1203 = vpop.f32.mrf.mxu0
    %1204 = vmatprep.mubr.bf16.mxu0 %v700
    %1205 = vmatmul.mubr.bf16.gmra.mxu0 %v699
    %v1206 = vpop.f32.mrf.mxu0
    %v1207 = vadd.f32 %v1046, %v1206
    %v1208 = vpop.f32.mrf.mxu0
    %v1209 = vpop.f32.mrf.mxu0
    %v1210 = vadd.f32 %v1049, %v1209
    %v1211 = vpop.f32.mrf.mxu0
    %1212 = vmatprep.mubr.bf16.mxu0 %v708
    %1213 = vmatmul.mubr.bf16.gmra.mxu0 %v707
    %v1214 = vpop.f32.mrf.mxu0
    %v1215 = vadd.f32 %v1054, %v1214
    %v1216 = vpop.f32.mrf.mxu0
    %v1217 = vpop.f32.mrf.mxu0
    %v1218 = vadd.f32 %v1057, %v1217
    %v1219 = vpop.f32.mrf.mxu0
    %1220 = vmatprep.mubr.bf16.mxu0 %v716
    %1221 = vmatmul.mubr.bf16.gmra.mxu0 %v715
    %v1222 = vpop.f32.mrf.mxu0
    %v1223 = vadd.f32 %v1062, %v1222
    %v1224 = vpop.f32.mrf.mxu0
    %v1225 = vpop.f32.mrf.mxu0
    %v1226 = vadd.f32 %v1065, %v1225
    %v1227 = vpop.f32.mrf.mxu0
    %1228 = vmatprep.mubr.bf16.mxu0 %v724
    %1229 = vmatmul.mubr.bf16.gmra.mxu0 %v723
    %v1230 = vpop.f32.mrf.mxu0
    %v1231 = vadd.f32 %v1070, %v1230
    %v1232 = vpop.f32.mrf.mxu0
    %v1233 = vpop.f32.mrf.mxu0
    %v1234 = vadd.f32 %v1073, %v1233
    %v1235 = vpop.f32.mrf.mxu0
    %1236 = vmatprep.mubr.bf16.mxu0 %v732
    %1237 = vmatmul.mubr.bf16.gmra.mxu0 %v731
    %v1238 = vpop.f32.mrf.mxu0
    %v1239 = vadd.f32 %v1078, %v1238
    %v1240 = vpop.f32.mrf.mxu0
    %v1241 = vpop.f32.mrf.mxu0
    %v1242 = vadd.f32 %v1081, %v1241
    %v1243 = vpop.f32.mrf.mxu0
    %1244 = vmatprep.mubr.bf16.mxu0 %v740
    %1245 = vmatmul.mubr.bf16.gmra.mxu0 %v739
    %v1246 = vpop.f32.mrf.mxu0
    %v1247 = vadd.f32 %v1086, %v1246
    %v1248 = vpop.f32.mrf.mxu0
    %v1249 = vpop.f32.mrf.mxu0
    %v1250 = vadd.f32 %v1089, %v1249
    %v1251 = vpop.f32.mrf.mxu0
    %1252 = vmatprep.mubr.bf16.mxu0 %v748
    %1253 = vmatmul.mubr.bf16.gmra.mxu0 %v747
    %v1254 = vpop.f32.mrf.mxu0
    %v1255 = vadd.f32 %v1094, %v1254
    %v1256 = vpop.f32.mrf.mxu0
    %v1257 = vpop.f32.mrf.mxu0
    %v1258 = vadd.f32 %v1097, %v1257
    %v1259 = vpop.f32.mrf.mxu0
    %1260 = vdwg.mxu0
    %1261 = vmatprep.subr.bf16.mxu0 0
    %1262 = vmatpush1.bf16.xpose.msra.mxu0 0
    %1263 = vmatprep.subr.bf16.mxu0 0
    %1264 = vmatpush1.bf16.xpose.msra.mxu0 0
    %1265 = vmatprep.subr.bf16.mxu0 0
    %1266 = vmatpush1.bf16.xpose.msra.mxu0 0
    %1267 = vmatprep.subr.bf16.mxu0 0
    %1268 = vmatpush1.bf16.xpose.msra.mxu0 0
    %1269 = vmatprep.subr.bf16.mxu0 0
    %1270 = vmatpush1.bf16.xpose.msra.mxu0 0
    %1271 = vmatprep.subr.bf16.mxu0 0
    %1272 = vmatpush1.bf16.xpose.msra.mxu0 0
    %1273 = vmatprep.subr.bf16.mxu0 0
    %1274 = vmatpush1.bf16.xpose.msra.mxu0 0
    %1275 = vmatprep.subr.bf16.mxu0 %v926
    %1276 = vmatpush1.bf16.xpose.msra.mxu0 %v912
    %1277 = vmatprep.subr.bf16.mxu0 0
    %1278 = vmatpush2.bf16.xpose.msra.mxu0 0
    %1279 = vmatprep.subr.bf16.mxu0 0
    %1280 = vmatpush2.bf16.xpose.msra.mxu0 0
    %1281 = vmatprep.subr.bf16.mxu0 0
    %1282 = vmatpush2.bf16.xpose.msra.mxu0 0
    %1283 = vmatprep.subr.bf16.mxu0 0
    %1284 = vmatpush2.bf16.xpose.msra.mxu0 0
    %1285 = vmatprep.subr.bf16.mxu0 0
    %1286 = vmatpush2.bf16.xpose.msra.mxu0 0
    %1287 = vmatprep.subr.bf16.mxu0 0
    %1288 = vmatpush2.bf16.xpose.msra.mxu0 0
    %1289 = vmatprep.subr.bf16.mxu0 0
    %1290 = vmatpush2.bf16.xpose.msra.mxu0 0
    %1291 = vmatprep.subr.bf16.mxu0 0
    %1292 = vmatpush2.bf16.xpose.msra.mxu0 0
    %1293 = vmatprep.mubr.bf16.mxu0 %v630
    %1294 = vmatmul.mubr.bf16.gmra.mxu0 %v629
    %v1295 = vpop.f32.mrf.mxu0
    %v1296 = vadd.f32 %v1135, %v1295
    %v1297 = vpop.f32.mrf.mxu0
    %v1298 = vpop.f32.mrf.mxu0
    %v1299 = vadd.f32 %v1138, %v1298
    %v1300 = vpop.f32.mrf.mxu0
    %1301 = vmatprep.mubr.bf16.mxu0 %v638
    %1302 = vmatmul.mubr.bf16.gmra.mxu0 %v637
    %v1303 = vpop.f32.mrf.mxu0
    %v1304 = vadd.f32 %v1143, %v1303
    %v1305 = vpop.f32.mrf.mxu0
    %v1306 = vpop.f32.mrf.mxu0
    %v1307 = vadd.f32 %v1146, %v1306
    %v1308 = vpop.f32.mrf.mxu0
    %1309 = vmatprep.mubr.bf16.mxu0 %v646
    %1310 = vmatmul.mubr.bf16.gmra.mxu0 %v645
    %v1311 = vpop.f32.mrf.mxu0
    %v1312 = vadd.f32 %v1151, %v1311
    %v1313 = vpop.f32.mrf.mxu0
    %v1314 = vpop.f32.mrf.mxu0
    %v1315 = vadd.f32 %v1154, %v1314
    %v1316 = vpop.f32.mrf.mxu0
    %1317 = vmatprep.mubr.bf16.mxu0 %v654
    %1318 = vmatmul.mubr.bf16.gmra.mxu0 %v653
    %v1319 = vpop.f32.mrf.mxu0
    %v1320 = vadd.f32 %v1159, %v1319
    %v1321 = vpop.f32.mrf.mxu0
    %v1322 = vpop.f32.mrf.mxu0
    %v1323 = vadd.f32 %v1162, %v1322
    %v1324 = vpop.f32.mrf.mxu0
    %1325 = vmatprep.mubr.bf16.mxu0 %v662
    %1326 = vmatmul.mubr.bf16.gmra.mxu0 %v661
    %v1327 = vpop.f32.mrf.mxu0
    %v1328 = vadd.f32 %v1167, %v1327
    %v1329 = vpop.f32.mrf.mxu0
    %v1330 = vpop.f32.mrf.mxu0
    %v1331 = vadd.f32 %v1170, %v1330
    %v1332 = vpop.f32.mrf.mxu0
    %1333 = vmatprep.mubr.bf16.mxu0 %v670
    %1334 = vmatmul.mubr.bf16.gmra.mxu0 %v669
    %v1335 = vpop.f32.mrf.mxu0
    %v1336 = vadd.f32 %v1175, %v1335
    %v1337 = vpop.f32.mrf.mxu0
    %v1338 = vpop.f32.mrf.mxu0
    %v1339 = vadd.f32 %v1178, %v1338
    %v1340 = vpop.f32.mrf.mxu0
    %1341 = vmatprep.mubr.bf16.mxu0 %v678
    %1342 = vmatmul.mubr.bf16.gmra.mxu0 %v677
    %v1343 = vpop.f32.mrf.mxu0
    %v1344 = vadd.f32 %v1183, %v1343
    %v1345 = vpop.f32.mrf.mxu0
    %v1346 = vpop.f32.mrf.mxu0
    %v1347 = vadd.f32 %v1186, %v1346
    %v1348 = vpop.f32.mrf.mxu0
    %1349 = vmatprep.mubr.bf16.mxu0 %v686
    %1350 = vmatmul.mubr.bf16.gmra.mxu0 %v685
    %v1351 = vpop.f32.mrf.mxu0
    %v1352 = vadd.f32 %v1191, %v1351
    %v1353 = vpop.f32.mrf.mxu0
    %v1354 = vpop.f32.mrf.mxu0
    %v1355 = vadd.f32 %v1194, %v1354
    %v1356 = vpop.f32.mrf.mxu0
    %1357 = vmatprep.mubr.bf16.mxu0 %v694
    %1358 = vmatmul.mubr.bf16.gmra.mxu0 %v693
    %v1359 = vpop.f32.mrf.mxu0
    %v1360 = vadd.f32 %v1199, %v1359
    %v1361 = vpop.f32.mrf.mxu0
    %v1362 = vpop.f32.mrf.mxu0
    %v1363 = vadd.f32 %v1202, %v1362
    %v1364 = vpop.f32.mrf.mxu0
    %1365 = vmatprep.mubr.bf16.mxu0 %v702
    %1366 = vmatmul.mubr.bf16.gmra.mxu0 %v701
    %v1367 = vpop.f32.mrf.mxu0
    %v1368 = vadd.f32 %v1207, %v1367
    %v1369 = vpop.f32.mrf.mxu0
    %v1370 = vpop.f32.mrf.mxu0
    %v1371 = vadd.f32 %v1210, %v1370
    %v1372 = vpop.f32.mrf.mxu0
    %1373 = vmatprep.mubr.bf16.mxu0 %v710
    %1374 = vmatmul.mubr.bf16.gmra.mxu0 %v709
    %v1375 = vpop.f32.mrf.mxu0
    %v1376 = vadd.f32 %v1215, %v1375
    %v1377 = vpop.f32.mrf.mxu0
    %v1378 = vpop.f32.mrf.mxu0
    %v1379 = vadd.f32 %v1218, %v1378
    %v1380 = vpop.f32.mrf.mxu0
    %1381 = vmatprep.mubr.bf16.mxu0 %v718
    %1382 = vmatmul.mubr.bf16.gmra.mxu0 %v717
    %v1383 = vpop.f32.mrf.mxu0
    %v1384 = vadd.f32 %v1223, %v1383
    %v1385 = vpop.f32.mrf.mxu0
    %v1386 = vpop.f32.mrf.mxu0
    %v1387 = vadd.f32 %v1226, %v1386
    %v1388 = vpop.f32.mrf.mxu0
    %1389 = vmatprep.mubr.bf16.mxu0 %v726
    %1390 = vmatmul.mubr.bf16.gmra.mxu0 %v725
    %v1391 = vpop.f32.mrf.mxu0
    %v1392 = vadd.f32 %v1231, %v1391
    %v1393 = vpop.f32.mrf.mxu0
    %v1394 = vpop.f32.mrf.mxu0
    %v1395 = vadd.f32 %v1234, %v1394
    %v1396 = vpop.f32.mrf.mxu0
    %1397 = vmatprep.mubr.bf16.mxu0 %v734
    %1398 = vmatmul.mubr.bf16.gmra.mxu0 %v733
    %v1399 = vpop.f32.mrf.mxu0
    %v1400 = vadd.f32 %v1239, %v1399
    %v1401 = vpop.f32.mrf.mxu0
    %v1402 = vpop.f32.mrf.mxu0
    %v1403 = vadd.f32 %v1242, %v1402
    %v1404 = vpop.f32.mrf.mxu0
    %1405 = vmatprep.mubr.bf16.mxu0 %v742
    %1406 = vmatmul.mubr.bf16.gmra.mxu0 %v741
    %v1407 = vpop.f32.mrf.mxu0
    %v1408 = vadd.f32 %v1247, %v1407
    %v1409 = vpop.f32.mrf.mxu0
    %v1410 = vpop.f32.mrf.mxu0
    %v1411 = vadd.f32 %v1250, %v1410
    %v1412 = vpop.f32.mrf.mxu0
    %1413 = vmatprep.mubr.bf16.mxu0 %v750
    %1414 = vmatmul.mubr.bf16.gmra.mxu0 %v749
    %v1415 = vpop.f32.mrf.mxu0
    %v1416 = vadd.f32 %v1255, %v1415
    %v1417 = vpop.f32.mrf.mxu0
    %v1418 = vpop.f32.mrf.mxu0
    %v1419 = vadd.f32 %v1258, %v1418
    %v1420 = vpop.f32.mrf.mxu0
    %1421 = vdwg.mxu0
    %1422 = vmatprep.subr.bf16.mxu0 0
    %1423 = vmatpush1.bf16.xpose.msra.mxu0 0
    %1424 = vmatprep.subr.bf16.mxu0 0
    %1425 = vmatpush1.bf16.xpose.msra.mxu0 0
    %1426 = vmatprep.subr.bf16.mxu0 0
    %1427 = vmatpush1.bf16.xpose.msra.mxu0 0
    %1428 = vmatprep.subr.bf16.mxu0 0
    %1429 = vmatpush1.bf16.xpose.msra.mxu0 0
    %1430 = vmatprep.subr.bf16.mxu0 0
    %1431 = vmatpush1.bf16.xpose.msra.mxu0 0
    %1432 = vmatprep.subr.bf16.mxu0 0
    %1433 = vmatpush1.bf16.xpose.msra.mxu0 0
    %1434 = vmatprep.subr.bf16.mxu0 0
    %1435 = vmatpush1.bf16.xpose.msra.mxu0 0
    %1436 = vmatprep.subr.bf16.mxu0 %v930
    %1437 = vmatpush1.bf16.xpose.msra.mxu0 %v928
    %1438 = vmatprep.subr.bf16.mxu0 0
    %1439 = vmatpush2.bf16.xpose.msra.mxu0 0
    %1440 = vmatprep.subr.bf16.mxu0 0
    %1441 = vmatpush2.bf16.xpose.msra.mxu0 0
    %1442 = vmatprep.subr.bf16.mxu0 0
    %1443 = vmatpush2.bf16.xpose.msra.mxu0 0
    %1444 = vmatprep.subr.bf16.mxu0 0
    %1445 = vmatpush2.bf16.xpose.msra.mxu0 0
    %1446 = vmatprep.subr.bf16.mxu0 0
    %1447 = vmatpush2.bf16.xpose.msra.mxu0 0
    %1448 = vmatprep.subr.bf16.mxu0 0
    %1449 = vmatpush2.bf16.xpose.msra.mxu0 0
    %1450 = vmatprep.subr.bf16.mxu0 0
    %1451 = vmatpush2.bf16.xpose.msra.mxu0 0
    %1452 = vmatprep.subr.bf16.mxu0 0
    %1453 = vmatpush2.bf16.xpose.msra.mxu0 0
    %1454 = vmatprep.mubr.bf16.mxu0 %v632
    %1455 = vmatmul.mubr.bf16.gmra.mxu0 %v631
    %v1456 = vpop.f32.mrf.mxu0
    %v1457 = vadd.f32 %v1296, %v1456
    %v1458 = vpop.f32.mrf.mxu0
    %v1459 = vpop.f32.mrf.mxu0
    %v1460 = vadd.f32 %v1299, %v1459
    %v1461 = vpop.f32.mrf.mxu0
    %1462 = vmatprep.mubr.bf16.mxu0 %v640
    %1463 = vmatmul.mubr.bf16.gmra.mxu0 %v639
    %v1464 = vpop.f32.mrf.mxu0
    %v1465 = vadd.f32 %v1304, %v1464
    %v1466 = vpop.f32.mrf.mxu0
    %v1467 = vpop.f32.mrf.mxu0
    %v1468 = vadd.f32 %v1307, %v1467
    %v1469 = vpop.f32.mrf.mxu0
    %1470 = vmatprep.mubr.bf16.mxu0 %v648
    %1471 = vmatmul.mubr.bf16.gmra.mxu0 %v647
    %v1472 = vpop.f32.mrf.mxu0
    %v1473 = vadd.f32 %v1312, %v1472
    %v1474 = vpop.f32.mrf.mxu0
    %v1475 = vpop.f32.mrf.mxu0
    %v1476 = vadd.f32 %v1315, %v1475
    %v1477 = vpop.f32.mrf.mxu0
    %1478 = vmatprep.mubr.bf16.mxu0 %v656
    %1479 = vmatmul.mubr.bf16.gmra.mxu0 %v655
    %v1480 = vpop.f32.mrf.mxu0
    %v1481 = vadd.f32 %v1320, %v1480
    %v1482 = vpop.f32.mrf.mxu0
    %v1483 = vpop.f32.mrf.mxu0
    %v1484 = vadd.f32 %v1323, %v1483
    %v1485 = vpop.f32.mrf.mxu0
    %1486 = vmatprep.mubr.bf16.mxu0 %v664
    %1487 = vmatmul.mubr.bf16.gmra.mxu0 %v663
    %v1488 = vpop.f32.mrf.mxu0
    %v1489 = vadd.f32 %v1328, %v1488
    %v1490 = vpop.f32.mrf.mxu0
    %v1491 = vpop.f32.mrf.mxu0
    %v1492 = vadd.f32 %v1331, %v1491
    %v1493 = vpop.f32.mrf.mxu0
    %1494 = vmatprep.mubr.bf16.mxu0 %v672
    %1495 = vmatmul.mubr.bf16.gmra.mxu0 %v671
    %v1496 = vpop.f32.mrf.mxu0
    %v1497 = vadd.f32 %v1336, %v1496
    %v1498 = vpop.f32.mrf.mxu0
    %v1499 = vpop.f32.mrf.mxu0
    %v1500 = vadd.f32 %v1339, %v1499
    %v1501 = vpop.f32.mrf.mxu0
    %1502 = vmatprep.mubr.bf16.mxu0 %v680
    %1503 = vmatmul.mubr.bf16.gmra.mxu0 %v679
    %v1504 = vpop.f32.mrf.mxu0
    %v1505 = vadd.f32 %v1344, %v1504
    %v1506 = vpop.f32.mrf.mxu0
    %v1507 = vpop.f32.mrf.mxu0
    %v1508 = vadd.f32 %v1347, %v1507
    %v1509 = vpop.f32.mrf.mxu0
    %1510 = vmatprep.mubr.bf16.mxu0 %v688
    %1511 = vmatmul.mubr.bf16.gmra.mxu0 %v687
    %v1512 = vpop.f32.mrf.mxu0
    %v1513 = vadd.f32 %v1352, %v1512
    %v1514 = vpop.f32.mrf.mxu0
    %v1515 = vpop.f32.mrf.mxu0
    %v1516 = vadd.f32 %v1355, %v1515
    %v1517 = vpop.f32.mrf.mxu0
    %1518 = vmatprep.mubr.bf16.mxu0 %v696
    %1519 = vmatmul.mubr.bf16.gmra.mxu0 %v695
    %v1520 = vpop.f32.mrf.mxu0
    %v1521 = vadd.f32 %v1360, %v1520
    %v1522 = vpop.f32.mrf.mxu0
    %v1523 = vpop.f32.mrf.mxu0
    %v1524 = vadd.f32 %v1363, %v1523
    %v1525 = vpop.f32.mrf.mxu0
    %1526 = vmatprep.mubr.bf16.mxu0 %v704
    %1527 = vmatmul.mubr.bf16.gmra.mxu0 %v703
    %v1528 = vpop.f32.mrf.mxu0
    %v1529 = vadd.f32 %v1368, %v1528
    %v1530 = vpop.f32.mrf.mxu0
    %v1531 = vpop.f32.mrf.mxu0
    %v1532 = vadd.f32 %v1371, %v1531
    %v1533 = vpop.f32.mrf.mxu0
    %1534 = vmatprep.mubr.bf16.mxu0 %v712
    %1535 = vmatmul.mubr.bf16.gmra.mxu0 %v711
    %v1536 = vpop.f32.mrf.mxu0
    %v1537 = vadd.f32 %v1376, %v1536
    %v1538 = vpop.f32.mrf.mxu0
    %v1539 = vpop.f32.mrf.mxu0
    %v1540 = vadd.f32 %v1379, %v1539
    %v1541 = vpop.f32.mrf.mxu0
    %1542 = vmatprep.mubr.bf16.mxu0 %v720
    %1543 = vmatmul.mubr.bf16.gmra.mxu0 %v719
    %v1544 = vpop.f32.mrf.mxu0
    %v1545 = vadd.f32 %v1384, %v1544
    %v1546 = vpop.f32.mrf.mxu0
    %v1547 = vpop.f32.mrf.mxu0
    %v1548 = vadd.f32 %v1387, %v1547
    %v1549 = vpop.f32.mrf.mxu0
    %1550 = vmatprep.mubr.bf16.mxu0 %v728
    %1551 = vmatmul.mubr.bf16.gmra.mxu0 %v727
    %v1552 = vpop.f32.mrf.mxu0
    %v1553 = vadd.f32 %v1392, %v1552
    %v1554 = vpop.f32.mrf.mxu0
    %v1555 = vpop.f32.mrf.mxu0
    %v1556 = vadd.f32 %v1395, %v1555
    %v1557 = vpop.f32.mrf.mxu0
    %1558 = vmatprep.mubr.bf16.mxu0 %v736
    %1559 = vmatmul.mubr.bf16.gmra.mxu0 %v735
    %v1560 = vpop.f32.mrf.mxu0
    %v1561 = vadd.f32 %v1400, %v1560
    %v1562 = vpop.f32.mrf.mxu0
    %v1563 = vpop.f32.mrf.mxu0
    %v1564 = vadd.f32 %v1403, %v1563
    %v1565 = vpop.f32.mrf.mxu0
    %1566 = vmatprep.mubr.bf16.mxu0 %v744
    %1567 = vmatmul.mubr.bf16.gmra.mxu0 %v743
    %v1568 = vpop.f32.mrf.mxu0
    %v1569 = vadd.f32 %v1408, %v1568
    %v1570 = vpop.f32.mrf.mxu0
    %v1571 = vpop.f32.mrf.mxu0
    %v1572 = vadd.f32 %v1411, %v1571
    %v1573 = vpop.f32.mrf.mxu0
    %1574 = vmatprep.mubr.bf16.mxu0 %v752
    %1575 = vmatmul.mubr.bf16.gmra.mxu0 %v751
    %v1576 = vpop.f32.mrf.mxu0
    %v1577 = vadd.f32 %v1416, %v1576
    %v1578 = vpop.f32.mrf.mxu0
    %v1579 = vpop.f32.mrf.mxu0
    %v1580 = vadd.f32 %v1419, %v1579
    %v1581 = vpop.f32.mrf.mxu0
    %1582 = vdwg.mxu0
    %v1583 = vadd.f32 %v81, %v1457
    %v1584 = vadd.f32 %v82, %v1460
    %v1585 = vadd.f32 %v83, %v1465
    %v1586 = vadd.f32 %v84, %v1468
    %v1587 = vadd.f32 %v85, %v1473
    %v1588 = vadd.f32 %v86, %v1476
    %v1589 = vadd.f32 %v87, %v1481
    %v1590 = vadd.f32 %v88, %v1484
    %v1591 = vadd.f32 %v89, %v1489
    %v1592 = vadd.f32 %v90, %v1492
    %v1593 = vadd.f32 %v91, %v1497
    %v1594 = vadd.f32 %v92, %v1500
    %v1595 = vadd.f32 %v93, %v1505
    %v1596 = vadd.f32 %v94, %v1508
    %v1597 = vadd.f32 %v95, %v1513
    %v1598 = vadd.f32 %v96, %v1516
    %v1599 = vadd.f32 %v97, %v1521
    %v1600 = vadd.f32 %v98, %v1524
    %v1601 = vadd.f32 %v99, %v1529
    %v1602 = vadd.f32 %v100, %v1532
    %v1603 = vadd.f32 %v101, %v1537
    %v1604 = vadd.f32 %v102, %v1540
    %v1605 = vadd.f32 %v103, %v1545
    %v1606 = vadd.f32 %v104, %v1548
    %v1607 = vadd.f32 %v105, %v1553
    %v1608 = vadd.f32 %v106, %v1556
    %v1609 = vadd.f32 %v107, %v1561
    %v1610 = vadd.f32 %v108, %v1564
    %v1611 = vadd.f32 %v109, %v1569
    %v1612 = vadd.f32 %v110, %v1572
    %v1613 = vadd.f32 %v111, %v1577
    %v1614 = vadd.f32 %v112, %v1580
    %vm1615 = vcmask 15360
    %1616 = vst.msk [vmem:[#allocation2] sm:$0xff] %vm1615, %v1583
    %1617 = vst.msk [vmem:[#allocation2 + $0x8] sm:$0xff] %vm1615, %v1584
    %1618 = vst.msk [vmem:[#allocation2 + $0x10] sm:$0xff] %vm1615, %v1585
    %1619 = vst.msk [vmem:[#allocation2 + $0x18] sm:$0xff] %vm1615, %v1586
    %1620 = vst.msk [vmem:[#allocation2 + $0x20] sm:$0xff] %vm1615, %v1587
    %1621 = vst.msk [vmem:[#allocation2 + $0x28] sm:$0xff] %vm1615, %v1588
    %1622 = vst.msk [vmem:[#allocation2 + $0x30] sm:$0xff] %vm1615, %v1589
    %1623 = vst.msk [vmem:[#allocation2 + $0x38] sm:$0xff] %vm1615, %v1590
    %1624 = vst.msk [vmem:[#allocation2 + $0x40] sm:$0xff] %vm1615, %v1591
    %1625 = vst.msk [vmem:[#allocation2 + $0x48] sm:$0xff] %vm1615, %v1592
    %1626 = vst.msk [vmem:[#allocation2 + $0x50] sm:$0xff] %vm1615, %v1593
    %1627 = vst.msk [vmem:[#allocation2 + $0x58] sm:$0xff] %vm1615, %v1594
    %1628 = vst.msk [vmem:[#allocation2 + $0x60] sm:$0xff] %vm1615, %v1595
    %1629 = vst.msk [vmem:[#allocation2 + $0x68] sm:$0xff] %vm1615, %v1596
    %1630 = vst.msk [vmem:[#allocation2 + $0x70] sm:$0xff] %vm1615, %v1597
    %1631 = vst.msk [vmem:[#allocation2 + $0x78] sm:$0xff] %vm1615, %v1598
    %1632 = vst.msk [vmem:[#allocation2 + $0x80] sm:$0xff] %vm1615, %v1599
    %1633 = vst.msk [vmem:[#allocation2 + $0x88] sm:$0xff] %vm1615, %v1600
    %1634 = vst.msk [vmem:[#allocation2 + $0x90] sm:$0xff] %vm1615, %v1601
    %1635 = vst.msk [vmem:[#allocation2 + $0x98] sm:$0xff] %vm1615, %v1602
    %1636 = vst.msk [vmem:[#allocation2 + $0xa0] sm:$0xff] %vm1615, %v1603
    %1637 = vst.msk [vmem:[#allocation2 + $0xa8] sm:$0xff] %vm1615, %v1604
    %1638 = vst.msk [vmem:[#allocation2 + $0xb0] sm:$0xff] %vm1615, %v1605
    %1639 = vst.msk [vmem:[#allocation2 + $0xb8] sm:$0xff] %vm1615, %v1606
    %1640 = vst.msk [vmem:[#allocation2 + $0xc0] sm:$0xff] %vm1615, %v1607
    %1641 = vst.msk [vmem:[#allocation2 + $0xc8] sm:$0xff] %vm1615, %v1608
    %1642 = vst.msk [vmem:[#allocation2 + $0xd0] sm:$0xff] %vm1615, %v1609
    %1643 = vst.msk [vmem:[#allocation2 + $0xd8] sm:$0xff] %vm1615, %v1610
    %1644 = vst.msk [vmem:[#allocation2 + $0xe0] sm:$0xff] %vm1615, %v1611
    %1645 = vst.msk [vmem:[#allocation2 + $0xe8] sm:$0xff] %vm1615, %v1612
    %1646 = vst.msk [vmem:[#allocation2 + $0xf0] sm:$0xff] %vm1615, %v1613
    %1647 = vst.msk [vmem:[#allocation2 + $0xf8] sm:$0xff] %vm1615, %v1614
    // Predicated region
    $region22: #{tpu_custom_call.1} parent=1 // pred_check
      %p1648 = pneg %p39
    $region23: #{tpu_custom_call.1} parent=1 // pred_check_branch
      %1650 = sbr.rel (%p1648) target = $region25
    $region24: #{tpu_custom_call.1} parent=1 // pred_region
      %v1651 = vld [vmem:[#allocation2] sm:$0xff]
      %v1652 = vld [vmem:[#allocation2 + $0x8] sm:$0xff]
      %v1653 = vld [vmem:[#allocation2 + $0x10] sm:$0xff]
      %v1654 = vld [vmem:[#allocation2 + $0x18] sm:$0xff]
      %v1655 = vld [vmem:[#allocation2 + $0x20] sm:$0xff]
      %v1656 = vld [vmem:[#allocation2 + $0x28] sm:$0xff]
      %v1657 = vld [vmem:[#allocation2 + $0x30] sm:$0xff]
      %v1658 = vld [vmem:[#allocation2 + $0x38] sm:$0xff]
      %v1659 = vld [vmem:[#allocation2 + $0x40] sm:$0xff]
      %v1660 = vld [vmem:[#allocation2 + $0x48] sm:$0xff]
      %v1661 = vld [vmem:[#allocation2 + $0x50] sm:$0xff]
      %v1662 = vld [vmem:[#allocation2 + $0x58] sm:$0xff]
      %v1663 = vld [vmem:[#allocation2 + $0x60] sm:$0xff]
      %v1664 = vld [vmem:[#allocation2 + $0x68] sm:$0xff]
      %v1665 = vld [vmem:[#allocation2 + $0x70] sm:$0xff]
      %v1666 = vld [vmem:[#allocation2 + $0x78] sm:$0xff]
      %v1667 = vld [vmem:[#allocation2 + $0x80] sm:$0xff]
      %v1668 = vld [vmem:[#allocation2 + $0x88] sm:$0xff]
      %v1669 = vld [vmem:[#allocation2 + $0x90] sm:$0xff]
      %v1670 = vld [vmem:[#allocation2 + $0x98] sm:$0xff]
      %v1671 = vld [vmem:[#allocation2 + $0xa0] sm:$0xff]
      %v1672 = vld [vmem:[#allocation2 + $0xa8] sm:$0xff]
      %v1673 = vld [vmem:[#allocation2 + $0xb0] sm:$0xff]
      %v1674 = vld [vmem:[#allocation2 + $0xb8] sm:$0xff]
      %v1675 = vld [vmem:[#allocation2 + $0xc0] sm:$0xff]
      %v1676 = vld [vmem:[#allocation2 + $0xc8] sm:$0xff]
      %v1677 = vld [vmem:[#allocation2 + $0xd0] sm:$0xff]
      %v1678 = vld [vmem:[#allocation2 + $0xd8] sm:$0xff]
      %v1679 = vld [vmem:[#allocation2 + $0xe0] sm:$0xff]
      %v1680 = vld [vmem:[#allocation2 + $0xe8] sm:$0xff]
      %v1681 = vld [vmem:[#allocation2 + $0xf0] sm:$0xff]
      %v1682 = vld [vmem:[#allocation2 + $0xf8] sm:$0xff]
      %v1683 = vmul.f32 %v1651, %v1651
      %v1684 = vmul.f32 %v1652, %v1652
      %v1685 = vmul.f32 %v1653, %v1653
      %v1686 = vmul.f32 %v1654, %v1654
      %v1687 = vmul.f32 %v1655, %v1655
      %v1688 = vmul.f32 %v1656, %v1656
      %v1689 = vmul.f32 %v1657, %v1657
      %v1690 = vmul.f32 %v1658, %v1658
      %v1691 = vmul.f32 %v1659, %v1659
      %v1692 = vmul.f32 %v1660, %v1660
      %v1693 = vmul.f32 %v1661, %v1661
      %v1694 = vmul.f32 %v1662, %v1662
      %v1695 = vmul.f32 %v1663, %v1663
      %v1696 = vmul.f32 %v1664, %v1664
      %v1697 = vmul.f32 %v1665, %v1665
      %v1698 = vmul.f32 %v1666, %v1666
      %v1699 = vmul.f32 %v1667, %v1667
      %v1700 = vmul.f32 %v1668, %v1668
      %v1701 = vmul.f32 %v1669, %v1669
      %v1702 = vmul.f32 %v1670, %v1670
      %v1703 = vmul.f32 %v1671, %v1671
      %v1704 = vmul.f32 %v1672, %v1672
      %v1705 = vmul.f32 %v1673, %v1673
      %v1706 = vmul.f32 %v1674, %v1674
      %v1707 = vmul.f32 %v1675, %v1675
      %v1708 = vmul.f32 %v1676, %v1676
      %v1709 = vmul.f32 %v1677, %v1677
      %v1710 = vmul.f32 %v1678, %v1678
      %v1711 = vmul.f32 %v1679, %v1679
      %v1712 = vmul.f32 %v1680, %v1680
      %v1713 = vmul.f32 %v1681, %v1681
      %v1714 = vmul.f32 %v1682, %v1682
      %v1715 = vsel %vm1615, %v1683, 0.0
      %v1716 = vsel %vm1615, %v1684, 0.0
      %v1717 = vadd.f32 %v1715, %v1716
      %v1718 = vsel %vm1615, %v1685, 0.0
      %v1719 = vadd.f32 %v1717, %v1718
      %v1720 = vsel %vm1615, %v1686, 0.0
      %v1721 = vadd.f32 %v1719, %v1720
      %v1722 = vsel %vm1615, %v1687, 0.0
      %v1723 = vadd.f32 %v1721, %v1722
      %v1724 = vsel %vm1615, %v1688, 0.0
      %v1725 = vadd.f32 %v1723, %v1724
      %v1726 = vsel %vm1615, %v1689, 0.0
      %v1727 = vadd.f32 %v1725, %v1726
      %v1728 = vsel %vm1615, %v1690, 0.0
      %v1729 = vadd.f32 %v1727, %v1728
      %v1730 = vsel %vm1615, %v1691, 0.0
      %v1731 = vadd.f32 %v1729, %v1730
      %v1732 = vsel %vm1615, %v1692, 0.0
      %v1733 = vadd.f32 %v1731, %v1732
      %v1734 = vsel %vm1615, %v1693, 0.0
      %v1735 = vadd.f32 %v1733, %v1734
      %v1736 = vsel %vm1615, %v1694, 0.0
      %v1737 = vadd.f32 %v1735, %v1736
      %v1738 = vsel %vm1615, %v1695, 0.0
      %v1739 = vadd.f32 %v1737, %v1738
      %v1740 = vsel %vm1615, %v1696, 0.0
      %v1741 = vadd.f32 %v1739, %v1740
      %v1742 = vsel %vm1615, %v1697, 0.0
      %v1743 = vadd.f32 %v1741, %v1742
      %v1744 = vsel %vm1615, %v1698, 0.0
      %v1745 = vadd.f32 %v1743, %v1744
      %v1746 = vsel %vm1615, %v1699, 0.0
      %v1747 = vadd.f32 %v1745, %v1746
      %v1748 = vsel %vm1615, %v1700, 0.0
      %v1749 = vadd.f32 %v1747, %v1748
      %v1750 = vsel %vm1615, %v1701, 0.0
      %v1751 = vadd.f32 %v1749, %v1750
      %v1752 = vsel %vm1615, %v1702, 0.0
      %v1753 = vadd.f32 %v1751, %v1752
      %v1754 = vsel %vm1615, %v1703, 0.0
      %v1755 = vadd.f32 %v1753, %v1754
      %v1756 = vsel %vm1615, %v1704, 0.0
      %v1757 = vadd.f32 %v1755, %v1756
      %v1758 = vsel %vm1615, %v1705, 0.0
      %v1759 = vadd.f32 %v1757, %v1758
      %v1760 = vsel %vm1615, %v1706, 0.0
      %v1761 = vadd.f32 %v1759, %v1760
      %v1762 = vsel %vm1615, %v1707, 0.0
      %v1763 = vadd.f32 %v1761, %v1762
      %v1764 = vsel %vm1615, %v1708, 0.0
      %v1765 = vadd.f32 %v1763, %v1764
      %v1766 = vsel %vm1615, %v1709, 0.0
      %v1767 = vadd.f32 %v1765, %v1766
      %v1768 = vsel %vm1615, %v1710, 0.0
      %v1769 = vadd.f32 %v1767, %v1768
      %v1770 = vsel %vm1615, %v1711, 0.0
      %v1771 = vadd.f32 %v1769, %v1770
      %v1772 = vsel %vm1615, %v1712, 0.0
      %v1773 = vadd.f32 %v1771, %v1772
      %v1774 = vsel %vm1615, %v1713, 0.0
      %v1775 = vadd.f32 %v1773, %v1774
      %v1776 = vsel %vm1615, %v1714, 0.0
      %v1777 = vadd.f32 %v1775, %v1776
      %v1778 = vrot.slane %v1777, 4
      %v1779 = vadd.f32 %v1777, %v1778
      %v1780 = vrot.slane %v1779, 2
      %v1781 = vadd.f32 %v1779, %v1780
      %v1782 = vrot.slane %v1781, 1
      %v1783 = vadd.f32 %v1781, %v1782
      %v1784 = vlaneseq
      %v1785 = vand.u32 %v1784, 127
      %vm1786 = vcmp.eq.s32.totalorder %v1785, 0
      %1788 = vset.pattern.permute.xlu0 0
      %1789 = vperm.xlu0 %1788, %v1783
      %v1790 = vpop.permute.xlu0 %1789
      %v1792 = vsel %vm1786, %v1790, 0.0
      %vm1793 = vcmp.eq.s32.totalorder %v1785, 1
      %1794 = vset.pattern.permute.xlu0 1
      %1795 = vperm.xlu0 %1794, %v1783
      %v1796 = vpop.permute.xlu0 %1795
      %v1798 = vsel %vm1793, %v1796, %v1792
      %1799 = vst [vmem:[#allocation8] sm:$0x1] %v1798
    $region25: #{tpu_custom_call.1} parent=1 // pred_fallthru
      _
    // Predicated region
    $region26: #{tpu_custom_call.1} parent=1 // pred_check
      _
    $region27: #{tpu_custom_call.1} parent=1 // pred_check_branch
      %1801 = sbr.rel (0) target = $region29
    $region28: #{tpu_custom_call.1} parent=1 // pred_region
      %s1803 = ssub.s32 16, 16
      %1804 = vsyncadd [#allocation5], %s1803
      %s1806 = sshll.u32 [#allocation8], 4
      %s1807 = int_to_ptr.vmem [resolvable:$true] %s1806
      %1809 = dma.vmem_to_hbm [thread:$0]  %s1807, 16, %s2, [#allocation5]
    $region29: #{tpu_custom_call.1} parent=1 // pred_fallthru
      _
    // Predicated region
    $region30: #{tpu_custom_call.1} parent=1 // pred_check
      _
    $region31: #{tpu_custom_call.1} parent=1 // pred_check_branch
      %1811 = sbr.rel (0) target = $region33
    $region32: #{tpu_custom_call.1} parent=1 // pred_region
      %1812 = dma.done [#allocation5], 16
    $region33: #{tpu_custom_call.1} parent=1 // pred_fallthru
      _
    %1813 = vsyncpa [#allocation4], 1
    %1814 = vsyncpa [#allocation7], 1
    %1815 = vsyncpa [#allocation5], 1

</llo_original>
